<compile_context>
chip_gen: v7x
topology: tpu7x:2x2x1
jax: 0.10.0
libtpu: 0.0.40
codegen_flags: <defaults>
</compile_context>

<pallas_src>
import functools
import math

import jax
import jax.numpy as jnp
from jax import lax
from jax.experimental import pallas as pl
from jax.experimental.pallas import tpu as pltpu


def mpnn_kernel(x_ref, negmask_ref,
                w_enc_ref, b_enc_ref,
                w_qkv_ref, wo_ref,
                w_upd_ref, b_upd_ref,
                h_out_ref, attn_out_ref,
                *, n_rounds, m_rows, h_dim, embed_dim):
    M = m_rows
    E = embed_dim

    x = x_ref[...]                               # (M, input_size), bf16, batch-major
    neg = negmask_ref[...] > 0.5                 # (M, M) bool; True = attention forbidden
                                                 # (user mask OR cross-batch block)

    w_enc = w_enc_ref[...]                       # (in, h)   bf16
    w_qkv = w_qkv_ref[...]                       # (h, 3E)   bf16, norm folded into Q cols
    wo = wo_ref[...]                             # (E, E)    bf16
    w_upd = w_upd_ref[...]                       # (h+E, h)  bf16
    b_enc = b_enc_ref[...]                       # (1, h)    f32
    b_upd = jnp.broadcast_to(b_upd_ref[...], (M, h_dim))   # hoisted out of the K loop
    cdt = w_qkv.dtype                            # MXU operand dtype

    # ---- encoder: Linear + ReLU (one matmul over the whole slab) -----------------
    h = jnp.maximum(
        jnp.dot(x, w_enc, preferred_element_type=jnp.float32) + b_enc, 0.0)   # (M, h) f32

    attn = None
    for _ in range(n_rounds):                    # K = 3, unrolled
        # fused Q/K/V projection: one MXU pass (Q already carries norm_factor)
        qkv = jnp.dot(h.astype(cdt), w_qkv, preferred_element_type=jnp.float32)  # (M, 3E)
        q = qkv[:, 0:E].astype(cdt)
        k = qkv[:, E:2 * E].astype(cdt)
        v = qkv[:, 2 * E:3 * E].astype(cdt)

        # block-diagonal scores over the whole slab (contract last dims -> no transpose)
        compat = lax.dot_general(q, k, (((1,), (1,)), ((), ())),
                                 preferred_element_type=jnp.float32)           # (M, M)
        # finite mask value: forbidden entries underflow to exp(.) == 0; a fully
        # masked row becomes uniform and is zeroed below (no NaN propagation).
        compat = jnp.where(neg, -1e30, compat)

        cmax = jnp.max(compat, axis=-1, keepdims=True)
        p = jnp.exp(compat - cmax)
        den = jnp.sum(p, axis=-1, keepdims=True)
        attn = jnp.where(neg, 0.0, p / den)                                    # exact softmax

        heads = jnp.dot(attn.astype(cdt), v, preferred_element_type=jnp.float32)  # (M, E)
        m = jnp.dot(heads.astype(cdt), wo, preferred_element_type=jnp.float32)    # (M, E)

        # fused update: Linear(concat(h, m)) + ReLU as a single matmul
        hm = jnp.concatenate([h, m], axis=1).astype(cdt)                       # (M, h+E)
        h = jnp.maximum(
            jnp.dot(hm, w_upd, preferred_element_type=jnp.float32) + b_upd, 0.0)

    # ---- direct stores (batch-major h, block-diagonal attention) -----------------
    h_out_ref[...] = h.astype(h_out_ref.dtype)
    attn_out_ref[...] = attn.astype(attn_out_ref.dtype)


def _block_vmem_estimate(b_blk, *, num_agents, input_size, h_dim, embed_dim):
    """Rough per-step VMEM working set (bytes) for one batch block."""
    M = num_agents * b_blk
    io = 2 * (M * input_size * 2          # x block (bf16), double-buffered
              + M * M * 4                 # combined mask block
              + M * h_dim * 4             # h output block
              + M * M * 4)                # attention output block
    live = M * (3 * embed_dim + 2 * M + 2 * h_dim + 2 * embed_dim) * 4   # qkv/compat/h/hm/...
    weights = 2 * ((input_size + 4 * embed_dim + h_dim + embed_dim) * h_dim * 2 + 2 * h_dim * 4)
    return io + live + weights


def _choose_b_blk(bsz, *, num_agents, input_size, h_dim, embed_dim,
                  vmem_budget=24 * 2**20):
    """Largest divisor of bsz whose per-step working set fits the VMEM budget.
    Prefers the whole batch in one step (amortizes the ~0.35us/step overhead and
    maximizes the MXU M dimension).  For v7x megacore sharding, pass b_blk=bsz//2
    explicitly so nblk is even."""
    for d in sorted({d for d in range(1, bsz + 1) if bsz % d == 0}, reverse=True):
        if _block_vmem_estimate(d, num_agents=num_agents, input_size=input_size,
                                h_dim=h_dim, embed_dim=embed_dim) <= vmem_budget:
            return d
    return 1


def mpnn_fwd(inp, mask, params, *, num_agents, input_size, h_dim, embed_dim,
             K=3, b_blk=None, matmul_dtype=jnp.bfloat16):
    """inp: (num_agents * bsz, >= input_size) flat agent-major, like MPNN._fwd.
       mask: (bsz, num_agents, num_agents); 1 = attention not allowed.
       Returns (h_flat (num_agents*bsz, h_dim), attn (bsz, A, A)) like the torch code."""
    n_rows = inp.shape[0]
    assert n_rows % num_agents == 0, "inp rows must be a multiple of num_agents"
    bsz = n_rows // num_agents
    A = num_agents

    if b_blk is None:
        b_blk = _choose_b_blk(bsz, num_agents=A, input_size=input_size,
                              h_dim=h_dim, embed_dim=embed_dim)
    assert bsz % b_blk == 0, "b_blk must divide bsz"
    nblk = bsz // b_blk
    M = A * b_blk

    # ---- one XLA transpose to batch-major; the kernel never reshuffles ------------
    x = inp[:, :input_size].astype(jnp.float32).reshape(A, bsz, input_size)
    x = x.transpose(1, 0, 2).reshape(nblk, M, input_size).astype(matmul_dtype)

    # ---- combined negative-adjacency mask per block (user mask + cross-batch) -----
    bid = jnp.arange(M) // A
    cross = (bid[:, None] != bid[None, :]).astype(jnp.float32)                 # (M, M)
    usr = mask.astype(jnp.float32).reshape(nblk, b_blk, A, A)
    eye = jnp.eye(b_blk, dtype=jnp.float32)
    usr_bd = jnp.einsum("nbqk,bc->nbqck", usr, eye).reshape(nblk, M, M)
    negmask = jnp.maximum(usr_bd, cross[None, :, :])                           # (nblk, M, M)

    # ---- host-side (one-time) weight fusion: Q|K|V (norm folded) and [h; m] -------
    norm_factor = 1.0 / math.sqrt(embed_dim)       # key_dim = embed_dim, n_heads = 1
    w_qkv = jnp.concatenate(
        [params["wq"] * norm_factor, params["wk"], params["wv"]], axis=1)
    w_upd = jnp.concatenate([params["w_upd_h"], params["w_upd_m"]], axis=0)

    w_enc_c = params["w_enc"].astype(matmul_dtype)
    w_qkv_c = w_qkv.astype(matmul_dtype)
    wo_c = params["wo"].astype(matmul_dtype)
    w_upd_c = w_upd.astype(matmul_dtype)
    b_enc = params["b_enc"].astype(jnp.float32)
    b_upd = params["b_upd"].astype(jnp.float32)

    kern = functools.partial(mpnn_kernel, n_rounds=K, m_rows=M,
                             h_dim=h_dim, embed_dim=embed_dim)

    # Weights are tiny and constant across grid steps; default double-buffering is
    # fine at these sizes (consider pipeline_mode=pl.Buffered(1) when they grow on v7x).
    wspec = lambda shp: pl.BlockSpec(shp, lambda i: (0, 0))

    vmem_est = _block_vmem_estimate(b_blk, num_agents=A, input_size=input_size,
                                    h_dim=h_dim, embed_dim=embed_dim)
    vmem_limit = int(min(48 * 2**20, max(16 * 2**20, 2 * vmem_est)))

    h_bm, attn_bd = pl.pallas_call(
        kern,
        out_shape=(
            jax.ShapeDtypeStruct((nblk, M, h_dim), jnp.float32),
            jax.ShapeDtypeStruct((nblk, M, M), jnp.float32),
        ),
        grid_spec=pltpu.PrefetchScalarGridSpec(
            num_scalar_prefetch=0,
            grid=(nblk,),
            in_specs=[
                pl.BlockSpec((None, M, input_size), lambda i: (i, 0, 0)),   # x (batch-major)
                pl.BlockSpec((None, M, M), lambda i: (i, 0, 0)),            # combined mask
                wspec((input_size, h_dim)),                                 # w_enc
                wspec((1, h_dim)),                                          # b_enc
                wspec((h_dim, 3 * embed_dim)),                              # fused w_qkv
                wspec((embed_dim, embed_dim)),                              # W_out
                wspec((h_dim + embed_dim, h_dim)),                          # fused w_update
                wspec((1, h_dim)),                                          # b_update
            ],
            out_specs=[
                pl.BlockSpec((None, M, h_dim), lambda i: (i, 0, 0)),        # h (batch-major)
                pl.BlockSpec((None, M, M), lambda i: (i, 0, 0)),            # attn (block-diag)
            ],
        ),
        compiler_params=pltpu.CompilerParams(
            dimension_semantics=("parallel",),
            vmem_limit_bytes=vmem_limit,
        ),
    )(x, negmask, w_enc_c, b_enc, w_qkv_c, wo_c, w_upd_c, b_upd)

    # ---- wrapper-side layout restoration (cheap XLA ops) ---------------------------
    h_flat = (h_bm.reshape(bsz, A, h_dim)
              .transpose(1, 0, 2)
              .reshape(A * bsz, h_dim))                      # torch flat agent-major
    attn5 = attn_bd.reshape(nblk, b_blk, A, b_blk, A)
    attn = jnp.einsum("nbqck,bc->nbqk", attn5,
                      jnp.eye(b_blk, dtype=attn5.dtype)).reshape(bsz, A, A)
    return h_flat, attn


def mpnn_reference(inp, mask, params, *, num_agents, input_size, h_dim, embed_dim, K=3):
    """Pure-JAX mirror of MPNN._fwd (for correctness checking)."""
    A = num_agents
    bsz = inp.shape[0] // A
    x = inp[:, :input_size]
    h = jax.nn.relu(x @ params["w_enc"] + params["b_enc"])            # (A*bsz, h)
    h = h.reshape(A, bsz, h_dim).transpose(1, 0, 2)                   # (bsz, A, h)
    msk = mask > 0.5
    norm = 1.0 / math.sqrt(embed_dim)
    w_upd = jnp.concatenate([params["w_upd_h"], params["w_upd_m"]], axis=0)
    attn = None
    for _ in range(K):
        q = h @ params["wq"]; k = h @ params["wk"]; v = h @ params["wv"]
        compat = norm * jnp.einsum("bqd,bkd->bqk", q, k)
        compat = jnp.where(msk, -jnp.inf, compat)
        attn = jax.nn.softmax(compat, axis=-1)
        attn = jnp.where(msk, 0.0, attn)
        heads = jnp.einsum("bqk,bkd->bqd", attn, v)
        m = heads @ params["wo"]
        h = jax.nn.relu(jnp.concatenate([h, m], axis=-1) @ w_upd + params["b_upd"])
    h_flat = h.transpose(1, 0, 2).reshape(A * bsz, h_dim)
    return h_flat, attn


def init_params(key, *, input_size, h_dim, embed_dim):
    # Deterministic synthetic init (shapes match the torch module; n_heads = 1).
    ks = jax.random.split(key, 8)
    s = 0.1
    return {
        "w_enc":   s * jax.random.normal(ks[0], (input_size, h_dim), jnp.float32),
        "b_enc":   jnp.zeros((1, h_dim), jnp.float32),
        "wq":      s * jax.random.normal(ks[1], (h_dim, embed_dim), jnp.float32),
        "wk":      s * jax.random.normal(ks[2], (h_dim, embed_dim), jnp.float32),
        "wv":      s * jax.random.normal(ks[3], (h_dim, embed_dim), jnp.float32),
        "wo":      s * jax.random.normal(ks[4], (embed_dim, embed_dim), jnp.float32),
        "w_upd_h": s * jax.random.normal(ks[5], (h_dim, h_dim), jnp.float32),
        "w_upd_m": s * jax.random.normal(ks[6], (embed_dim, h_dim), jnp.float32),
        "b_upd":   jnp.zeros((1, h_dim), jnp.float32),
    }


if __name__ == "__main__":
    # Small shapes: num_agents=4, bsz=8 -> 32 rows, input_size=16, hidden_dim=32.
    # _choose_b_blk runs the whole batch in one grid step: M = 32, grid = (1,).
    num_agents = 4
    bsz = 8
    input_size = 16
    h_dim = 32
    embed_dim = h_dim            # embed_dim defaults to hidden_dim, n_heads = 1

    key = jax.random.PRNGKey(0)
    k_inp, k_par = jax.random.split(key)
    inp = jax.random.normal(k_inp, (num_agents * bsz, input_size), jnp.float32)
    params = init_params(k_par, input_size=input_size, h_dim=h_dim, embed_dim=embed_dim)

    # mask_dist is None by default -> calculate_mask returns all zeros (no masking).
    # TODO(synk): mask_dist / dropout masks (torch.roll + RNG) and the entity_mp
    # branch are host-side preprocessing; they are fed in via `mask` / extra inputs.
    mask0 = jnp.zeros((bsz, num_agents, num_agents), jnp.float32)

    h_out, attn = mpnn_fwd(inp, mask0, params,
                           num_agents=num_agents, input_size=input_size,
                           h_dim=h_dim, embed_dim=embed_dim, K=3)
    jax.block_until_ready((h_out, attn))

    assert h_out.shape == (num_agents * bsz, h_dim)
    assert attn.shape == (bsz, num_agents, num_agents)
    assert bool(jnp.all(jnp.isfinite(h_out)))

    # Correctness vs a pure-JAX reference (loose tol: bf16 MXU operands).
    h_ref, attn_ref = mpnn_reference(inp, mask0, params,
                                     num_agents=num_agents, input_size=input_size,
                                     h_dim=h_dim, embed_dim=embed_dim, K=3)
    assert bool(jnp.allclose(h_out, h_ref, rtol=5e-2, atol=2e-2)), "h mismatch (no mask)"
    assert bool(jnp.allclose(attn, attn_ref, rtol=5e-2, atol=2e-2)), "attn mismatch (no mask)"

    # Second check with a nontrivial (symmetric, non-degenerate) mask.
    mask1 = jnp.zeros((bsz, num_agents, num_agents), jnp.float32)
    mask1 = mask1.at[:, 0, 2].set(1.0).at[:, 2, 0].set(1.0)
    mask1 = mask1.at[: bsz // 2, 1, 3].set(1.0).at[: bsz // 2, 3, 1].set(1.0)

    h_out1, attn1 = mpnn_fwd(inp, mask1, params,
                             num_agents=num_agents, input_size=input_size,
                             h_dim=h_dim, embed_dim=embed_dim, K=3)
    jax.block_until_ready((h_out1, attn1))
    h_ref1, attn_ref1 = mpnn_reference(inp, mask1, params,
                                       num_agents=num_agents, input_size=input_size,
                                       h_dim=h_dim, embed_dim=embed_dim, K=3)
    assert bool(jnp.allclose(h_out1, h_ref1, rtol=5e-2, atol=2e-2)), "h mismatch (masked)"
    assert bool(jnp.allclose(attn1, attn_ref1, rtol=5e-2, atol=2e-2)), "attn mismatch (masked)"

    print("KERNEL_OK")
</pallas_src>

<mosaic_0001>
module attributes {stable_mosaic.version = 11 : i64} {
  func.func @mpnn_kernel(%arg0: i32, %arg1: memref<1x32x16xbf16, #tpu.memory_space<vmem>>, %arg2: memref<1x32x32xf32, #tpu.memory_space<vmem>>, %arg3: memref<16x32xbf16, #tpu.memory_space<vmem>>, %arg4: memref<1x32xf32, #tpu.memory_space<vmem>>, %arg5: memref<32x96xbf16, #tpu.memory_space<vmem>>, %arg6: memref<32x32xbf16, #tpu.memory_space<vmem>>, %arg7: memref<64x32xbf16, #tpu.memory_space<vmem>>, %arg8: memref<1x32xf32, #tpu.memory_space<vmem>>, %arg9: memref<1x32x32xf32, #tpu.memory_space<vmem>>, %arg10: memref<1x32x32xf32, #tpu.memory_space<vmem>>) attributes {dimension_semantics = [#tpu.dimension_semantics<parallel>], iteration_bounds = array<i64: 1>, scalar_prefetch = 0 : i64, scratch_operands = 0 : i64, tpu.core_type = #tpu.core_type<tc>, window_params = [{transform_indices = @transform_0, window_bounds = array<i64: 1, 32, 16>}, {transform_indices = @transform_1, window_bounds = array<i64: 1, 32, 32>}, {pipeline_mode = #tpu.pipeline_mode<synchronous>, transform_indices = @transform_2, window_bounds = array<i64: 16, 32>}, {pipeline_mode = #tpu.pipeline_mode<synchronous>, transform_indices = @transform_3, window_bounds = array<i64: 1, 32>}, {pipeline_mode = #tpu.pipeline_mode<synchronous>, transform_indices = @transform_4, window_bounds = array<i64: 32, 96>}, {pipeline_mode = #tpu.pipeline_mode<synchronous>, transform_indices = @transform_5, window_bounds = array<i64: 32, 32>}, {pipeline_mode = #tpu.pipeline_mode<synchronous>, transform_indices = @transform_6, window_bounds = array<i64: 64, 32>}, {pipeline_mode = #tpu.pipeline_mode<synchronous>, transform_indices = @transform_7, window_bounds = array<i64: 1, 32>}, {transform_indices = @transform_8, window_bounds = array<i64: 1, 32, 32>}, {transform_indices = @transform_9, window_bounds = array<i64: 1, 32, 32>}]} {
    %c0 = arith.constant 0 : index
    %c0_0 = arith.constant 0 : index
    %c0_1 = arith.constant 0 : index
    %0 = vector.load %arg1[%c0, %c0_0, %c0_1] : memref<1x32x16xbf16, #tpu.memory_space<vmem>>, vector<1x32x16xbf16>
    %1 = vector.shape_cast %0 : vector<1x32x16xbf16> to vector<32x16xbf16>
    %c0_2 = arith.constant 0 : index
    %c0_3 = arith.constant 0 : index
    %c0_4 = arith.constant 0 : index
    %2 = vector.load %arg2[%c0_2, %c0_3, %c0_4] : memref<1x32x32xf32, #tpu.memory_space<vmem>>, vector<1x32x32xf32>
    %3 = vector.shape_cast %2 : vector<1x32x32xf32> to vector<32x32xf32>
    %cst = arith.constant 5.000000e-01 : f32
    %4 = vector.broadcast %cst : f32 to vector<32x32xf32>
    %5 = arith.cmpf ogt, %3, %4 : vector<32x32xf32>
    %c0_5 = arith.constant 0 : index
    %c0_6 = arith.constant 0 : index
    %6 = vector.load %arg3[%c0_5, %c0_6] : memref<16x32xbf16, #tpu.memory_space<vmem>>, vector<16x32xbf16>
    %c0_7 = arith.constant 0 : index
    %c0_8 = arith.constant 0 : index
    %7 = vector.load %arg5[%c0_7, %c0_8] : memref<32x96xbf16, #tpu.memory_space<vmem>>, vector<32x96xbf16>
    %c0_9 = arith.constant 0 : index
    %c0_10 = arith.constant 0 : index
    %8 = vector.load %arg6[%c0_9, %c0_10] : memref<32x32xbf16, #tpu.memory_space<vmem>>, vector<32x32xbf16>
    %c0_11 = arith.constant 0 : index
    %c0_12 = arith.constant 0 : index
    %9 = vector.load %arg7[%c0_11, %c0_12] : memref<64x32xbf16, #tpu.memory_space<vmem>>, vector<64x32xbf16>
    %c0_13 = arith.constant 0 : index
    %c0_14 = arith.constant 0 : index
    %10 = vector.load %arg4[%c0_13, %c0_14] : memref<1x32xf32, #tpu.memory_space<vmem>>, vector<1x32xf32>
    %c0_15 = arith.constant 0 : index
    %c0_16 = arith.constant 0 : index
    %11 = vector.load %arg8[%c0_15, %c0_16] : memref<1x32xf32, #tpu.memory_space<vmem>>, vector<1x32xf32>
    %12 = vector.shape_cast %11 : vector<1x32xf32> to vector<1x32xf32>
    %13 = vector.broadcast %12 : vector<1x32xf32> to vector<32x32xf32>
    %cst_17 = arith.constant dense<0.000000e+00> : vector<32x32xf32>
    %14 = tpu.matmul %1, %6, %cst_17 {dimension_numbers = #tpu.dot_dimension_numbers<[1], [0], [0], [1], [0, 0, 1, 1], [], []>} : vector<32x16xbf16>, vector<16x32xbf16>, vector<32x32xf32> -> vector<32x32xf32>
    %15 = vector.broadcast %10 : vector<1x32xf32> to vector<32x32xf32>
    %16 = arith.addf %14, %15 : vector<32x32xf32>
    %cst_18 = arith.constant 0.000000e+00 : f32
    %17 = vector.broadcast %cst_18 : f32 to vector<32x32xf32>
    %18 = arith.maximumf %16, %17 : vector<32x32xf32>
    %19 = arith.truncf %18 : vector<32x32xf32> to vector<32x32xbf16>
    %cst_19 = arith.constant dense<0.000000e+00> : vector<32x96xf32>
    %20 = tpu.matmul %19, %7, %cst_19 {dimension_numbers = #tpu.dot_dimension_numbers<[1], [0], [0], [1], [0, 0, 1, 1], [], []>} : vector<32x32xbf16>, vector<32x96xbf16>, vector<32x96xf32> -> vector<32x96xf32>
    %21 = vector.extract_strided_slice %20 {offsets = [0, 0], sizes = [32, 32], strides = [1, 1]} : vector<32x96xf32> to vector<32x32xf32>
    %22 = arith.truncf %21 : vector<32x32xf32> to vector<32x32xbf16>
    %23 = vector.extract_strided_slice %20 {offsets = [0, 32], sizes = [32, 32], strides = [1, 1]} : vector<32x96xf32> to vector<32x32xf32>
    %24 = arith.truncf %23 : vector<32x32xf32> to vector<32x32xbf16>
    %25 = vector.extract_strided_slice %20 {offsets = [0, 64], sizes = [32, 32], strides = [1, 1]} : vector<32x96xf32> to vector<32x32xf32>
    %26 = arith.truncf %25 : vector<32x32xf32> to vector<32x32xbf16>
    %cst_20 = arith.constant dense<0.000000e+00> : vector<32x32xf32>
    %27 = tpu.matmul %22, %24, %cst_20 {dimension_numbers = #tpu.dot_dimension_numbers<[1], [1], [0], [0], [0, 0, 1, 0], [], []>} : vector<32x32xbf16>, vector<32x32xbf16>, vector<32x32xf32> -> vector<32x32xf32>
    %cst_21 = arith.constant -1.000000e+30 : f32
    %28 = vector.broadcast %cst_21 : f32 to vector<32x32xf32>
    %29 = arith.select %5, %28, %27 : vector<32x32xi1>, vector<32x32xf32>
    %cst_22 = arith.constant dense<0xFF800000> : vector<32xf32>
    %30 = vector.multi_reduction <maximumf>, %29, %cst_22 [1] : vector<32x32xf32> to vector<32xf32>
    %31 = vector.shape_cast %30 : vector<32xf32> to vector<32x1xf32>
    %32 = vector.broadcast %31 : vector<32x1xf32> to vector<32x32xf32>
    %33 = arith.subf %29, %32 : vector<32x32xf32>
    %34 = math.exp %33 : vector<32x32xf32>
    %cst_23 = arith.constant dense<0.000000e+00> : vector<32xf32>
    %35 = vector.multi_reduction <add>, %34, %cst_23 [1] : vector<32x32xf32> to vector<32xf32>
    %36 = vector.shape_cast %35 : vector<32xf32> to vector<32x1xf32>
    %37 = vector.broadcast %36 : vector<32x1xf32> to vector<32x32xf32>
    %38 = arith.divf %34, %37 : vector<32x32xf32>
    %cst_24 = arith.constant 0.000000e+00 : f32
    %39 = vector.broadcast %cst_24 : f32 to vector<32x32xf32>
    %40 = arith.select %5, %39, %38 : vector<32x32xi1>, vector<32x32xf32>
    %41 = arith.truncf %40 : vector<32x32xf32> to vector<32x32xbf16>
    %cst_25 = arith.constant dense<0.000000e+00> : vector<32x32xf32>
    %42 = tpu.matmul %41, %26, %cst_25 {dimension_numbers = #tpu.dot_dimension_numbers<[1], [0], [0], [1], [0, 0, 1, 1], [], []>} : vector<32x32xbf16>, vector<32x32xbf16>, vector<32x32xf32> -> vector<32x32xf32>
    %43 = arith.truncf %42 : vector<32x32xf32> to vector<32x32xbf16>
    %cst_26 = arith.constant dense<0.000000e+00> : vector<32x32xf32>
    %44 = tpu.matmul %43, %8, %cst_26 {dimension_numbers = #tpu.dot_dimension_numbers<[1], [0], [0], [1], [0, 0, 1, 1], [], []>} : vector<32x32xbf16>, vector<32x32xbf16>, vector<32x32xf32> -> vector<32x32xf32>
    %45 = tpu.concatenate %18, %44 in 1 : vector<32x32xf32>, vector<32x32xf32> -> vector<32x64xf32>
    %46 = arith.truncf %45 : vector<32x64xf32> to vector<32x64xbf16>
    %cst_27 = arith.constant dense<0.000000e+00> : vector<32x32xf32>
    %47 = tpu.matmul %46, %9, %cst_27 {dimension_numbers = #tpu.dot_dimension_numbers<[1], [0], [0], [1], [0, 0, 1, 1], [], []>} : vector<32x64xbf16>, vector<64x32xbf16>, vector<32x32xf32> -> vector<32x32xf32>
    %48 = arith.addf %47, %13 : vector<32x32xf32>
    %cst_28 = arith.constant 0.000000e+00 : f32
    %49 = vector.broadcast %cst_28 : f32 to vector<32x32xf32>
    %50 = arith.maximumf %48, %49 : vector<32x32xf32>
    %51 = arith.truncf %50 : vector<32x32xf32> to vector<32x32xbf16>
    %cst_29 = arith.constant dense<0.000000e+00> : vector<32x96xf32>
    %52 = tpu.matmul %51, %7, %cst_29 {dimension_numbers = #tpu.dot_dimension_numbers<[1], [0], [0], [1], [0, 0, 1, 1], [], []>} : vector<32x32xbf16>, vector<32x96xbf16>, vector<32x96xf32> -> vector<32x96xf32>
    %53 = vector.extract_strided_slice %52 {offsets = [0, 0], sizes = [32, 32], strides = [1, 1]} : vector<32x96xf32> to vector<32x32xf32>
    %54 = arith.truncf %53 : vector<32x32xf32> to vector<32x32xbf16>
    %55 = vector.extract_strided_slice %52 {offsets = [0, 32], sizes = [32, 32], strides = [1, 1]} : vector<32x96xf32> to vector<32x32xf32>
    %56 = arith.truncf %55 : vector<32x32xf32> to vector<32x32xbf16>
    %57 = vector.extract_strided_slice %52 {offsets = [0, 64], sizes = [32, 32], strides = [1, 1]} : vector<32x96xf32> to vector<32x32xf32>
    %58 = arith.truncf %57 : vector<32x32xf32> to vector<32x32xbf16>
    %cst_30 = arith.constant dense<0.000000e+00> : vector<32x32xf32>
    %59 = tpu.matmul %54, %56, %cst_30 {dimension_numbers = #tpu.dot_dimension_numbers<[1], [1], [0], [0], [0, 0, 1, 0], [], []>} : vector<32x32xbf16>, vector<32x32xbf16>, vector<32x32xf32> -> vector<32x32xf32>
    %cst_31 = arith.constant -1.000000e+30 : f32
    %60 = vector.broadcast %cst_31 : f32 to vector<32x32xf32>
    %61 = arith.select %5, %60, %59 : vector<32x32xi1>, vector<32x32xf32>
    %cst_32 = arith.constant dense<0xFF800000> : vector<32xf32>
    %62 = vector.multi_reduction <maximumf>, %61, %cst_32 [1] : vector<32x32xf32> to vector<32xf32>
    %63 = vector.shape_cast %62 : vector<32xf32> to vector<32x1xf32>
    %64 = vector.broadcast %63 : vector<32x1xf32> to vector<32x32xf32>
    %65 = arith.subf %61, %64 : vector<32x32xf32>
    %66 = math.exp %65 : vector<32x32xf32>
    %cst_33 = arith.constant dense<0.000000e+00> : vector<32xf32>
    %67 = vector.multi_reduction <add>, %66, %cst_33 [1] : vector<32x32xf32> to vector<32xf32>
    %68 = vector.shape_cast %67 : vector<32xf32> to vector<32x1xf32>
    %69 = vector.broadcast %68 : vector<32x1xf32> to vector<32x32xf32>
    %70 = arith.divf %66, %69 : vector<32x32xf32>
    %cst_34 = arith.constant 0.000000e+00 : f32
    %71 = vector.broadcast %cst_34 : f32 to vector<32x32xf32>
    %72 = arith.select %5, %71, %70 : vector<32x32xi1>, vector<32x32xf32>
    %73 = arith.truncf %72 : vector<32x32xf32> to vector<32x32xbf16>
    %cst_35 = arith.constant dense<0.000000e+00> : vector<32x32xf32>
    %74 = tpu.matmul %73, %58, %cst_35 {dimension_numbers = #tpu.dot_dimension_numbers<[1], [0], [0], [1], [0, 0, 1, 1], [], []>} : vector<32x32xbf16>, vector<32x32xbf16>, vector<32x32xf32> -> vector<32x32xf32>
    %75 = arith.truncf %74 : vector<32x32xf32> to vector<32x32xbf16>
    %cst_36 = arith.constant dense<0.000000e+00> : vector<32x32xf32>
    %76 = tpu.matmul %75, %8, %cst_36 {dimension_numbers = #tpu.dot_dimension_numbers<[1], [0], [0], [1], [0, 0, 1, 1], [], []>} : vector<32x32xbf16>, vector<32x32xbf16>, vector<32x32xf32> -> vector<32x32xf32>
    %77 = tpu.concatenate %50, %76 in 1 : vector<32x32xf32>, vector<32x32xf32> -> vector<32x64xf32>
    %78 = arith.truncf %77 : vector<32x64xf32> to vector<32x64xbf16>
    %cst_37 = arith.constant dense<0.000000e+00> : vector<32x32xf32>
    %79 = tpu.matmul %78, %9, %cst_37 {dimension_numbers = #tpu.dot_dimension_numbers<[1], [0], [0], [1], [0, 0, 1, 1], [], []>} : vector<32x64xbf16>, vector<64x32xbf16>, vector<32x32xf32> -> vector<32x32xf32>
    %80 = arith.addf %79, %13 : vector<32x32xf32>
    %cst_38 = arith.constant 0.000000e+00 : f32
    %81 = vector.broadcast %cst_38 : f32 to vector<32x32xf32>
    %82 = arith.maximumf %80, %81 : vector<32x32xf32>
    %83 = arith.truncf %82 : vector<32x32xf32> to vector<32x32xbf16>
    %cst_39 = arith.constant dense<0.000000e+00> : vector<32x96xf32>
    %84 = tpu.matmul %83, %7, %cst_39 {dimension_numbers = #tpu.dot_dimension_numbers<[1], [0], [0], [1], [0, 0, 1, 1], [], []>} : vector<32x32xbf16>, vector<32x96xbf16>, vector<32x96xf32> -> vector<32x96xf32>
    %85 = vector.extract_strided_slice %84 {offsets = [0, 0], sizes = [32, 32], strides = [1, 1]} : vector<32x96xf32> to vector<32x32xf32>
    %86 = arith.truncf %85 : vector<32x32xf32> to vector<32x32xbf16>
    %87 = vector.extract_strided_slice %84 {offsets = [0, 32], sizes = [32, 32], strides = [1, 1]} : vector<32x96xf32> to vector<32x32xf32>
    %88 = arith.truncf %87 : vector<32x32xf32> to vector<32x32xbf16>
    %89 = vector.extract_strided_slice %84 {offsets = [0, 64], sizes = [32, 32], strides = [1, 1]} : vector<32x96xf32> to vector<32x32xf32>
    %90 = arith.truncf %89 : vector<32x32xf32> to vector<32x32xbf16>
    %cst_40 = arith.constant dense<0.000000e+00> : vector<32x32xf32>
    %91 = tpu.matmul %86, %88, %cst_40 {dimension_numbers = #tpu.dot_dimension_numbers<[1], [1], [0], [0], [0, 0, 1, 0], [], []>} : vector<32x32xbf16>, vector<32x32xbf16>, vector<32x32xf32> -> vector<32x32xf32>
    %cst_41 = arith.constant -1.000000e+30 : f32
    %92 = vector.broadcast %cst_41 : f32 to vector<32x32xf32>
    %93 = arith.select %5, %92, %91 : vector<32x32xi1>, vector<32x32xf32>
    %cst_42 = arith.constant dense<0xFF800000> : vector<32xf32>
    %94 = vector.multi_reduction <maximumf>, %93, %cst_42 [1] : vector<32x32xf32> to vector<32xf32>
    %95 = vector.shape_cast %94 : vector<32xf32> to vector<32x1xf32>
    %96 = vector.broadcast %95 : vector<32x1xf32> to vector<32x32xf32>
    %97 = arith.subf %93, %96 : vector<32x32xf32>
    %98 = math.exp %97 : vector<32x32xf32>
    %cst_43 = arith.constant dense<0.000000e+00> : vector<32xf32>
    %99 = vector.multi_reduction <add>, %98, %cst_43 [1] : vector<32x32xf32> to vector<32xf32>
    %100 = vector.shape_cast %99 : vector<32xf32> to vector<32x1xf32>
    %101 = vector.broadcast %100 : vector<32x1xf32> to vector<32x32xf32>
    %102 = arith.divf %98, %101 : vector<32x32xf32>
    %cst_44 = arith.constant 0.000000e+00 : f32
    %103 = vector.broadcast %cst_44 : f32 to vector<32x32xf32>
    %104 = arith.select %5, %103, %102 : vector<32x32xi1>, vector<32x32xf32>
    %105 = arith.truncf %104 : vector<32x32xf32> to vector<32x32xbf16>
    %cst_45 = arith.constant dense<0.000000e+00> : vector<32x32xf32>
    %106 = tpu.matmul %105, %90, %cst_45 {dimension_numbers = #tpu.dot_dimension_numbers<[1], [0], [0], [1], [0, 0, 1, 1], [], []>} : vector<32x32xbf16>, vector<32x32xbf16>, vector<32x32xf32> -> vector<32x32xf32>
    %107 = arith.truncf %106 : vector<32x32xf32> to vector<32x32xbf16>
    %cst_46 = arith.constant dense<0.000000e+00> : vector<32x32xf32>
    %108 = tpu.matmul %107, %8, %cst_46 {dimension_numbers = #tpu.dot_dimension_numbers<[1], [0], [0], [1], [0, 0, 1, 1], [], []>} : vector<32x32xbf16>, vector<32x32xbf16>, vector<32x32xf32> -> vector<32x32xf32>
    %109 = tpu.concatenate %82, %108 in 1 : vector<32x32xf32>, vector<32x32xf32> -> vector<32x64xf32>
    %110 = arith.truncf %109 : vector<32x64xf32> to vector<32x64xbf16>
    %cst_47 = arith.constant dense<0.000000e+00> : vector<32x32xf32>
    %111 = tpu.matmul %110, %9, %cst_47 {dimension_numbers = #tpu.dot_dimension_numbers<[1], [0], [0], [1], [0, 0, 1, 1], [], []>} : vector<32x64xbf16>, vector<64x32xbf16>, vector<32x32xf32> -> vector<32x32xf32>
    %112 = arith.addf %111, %13 : vector<32x32xf32>
    %cst_48 = arith.constant 0.000000e+00 : f32
    %113 = vector.broadcast %cst_48 : f32 to vector<32x32xf32>
    %114 = arith.maximumf %112, %113 : vector<32x32xf32>
    %c0_49 = arith.constant 0 : index
    %c0_50 = arith.constant 0 : index
    %c0_51 = arith.constant 0 : index
    %115 = vector.load %arg9[%c0_49, %c0_50, %c0_51] : memref<1x32x32xf32, #tpu.memory_space<vmem>>, vector<1x32x32xf32>
    %116 = vector.shape_cast %115 : vector<1x32x32xf32> to vector<32x32xf32>
    %117 = vector.shape_cast %114 : vector<32x32xf32> to vector<1x32x32xf32>
    tpu.vector_store %arg9[%c0_49, %c0_50, %c0_51], %117 {strides = array<i32>} : memref<1x32x32xf32, #tpu.memory_space<vmem>>, vector<1x32x32xf32>,
    %c0_52 = arith.constant 0 : index
    %c0_53 = arith.constant 0 : index
    %c0_54 = arith.constant 0 : index
    %118 = vector.load %arg10[%c0_52, %c0_53, %c0_54] : memref<1x32x32xf32, #tpu.memory_space<vmem>>, vector<1x32x32xf32>
    %119 = vector.shape_cast %118 : vector<1x32x32xf32> to vector<32x32xf32>
    %120 = vector.shape_cast %104 : vector<32x32xf32> to vector<1x32x32xf32>
    tpu.vector_store %arg10[%c0_52, %c0_53, %c0_54], %120 {strides = array<i32>} : memref<1x32x32xf32, #tpu.memory_space<vmem>>, vector<1x32x32xf32>,
    return
  }
  func.func @transform_0(%arg0: i32) -> (i32, i32, i32) {
    %c0_i32 = arith.constant 0 : i32
    %c0_i32_0 = arith.constant 0 : i32
    %c0_i32_1 = arith.constant 0 : i32
    return %arg0, %c0_i32, %c0_i32_0 : i32, i32, i32
  }
  func.func @transform_1(%arg0: i32) -> (i32, i32, i32) {
    %c0_i32 = arith.constant 0 : i32
    %c0_i32_0 = arith.constant 0 : i32
    %c0_i32_1 = arith.constant 0 : i32
    return %arg0, %c0_i32, %c0_i32_0 : i32, i32, i32
  }
  func.func @transform_2(%arg0: i32) -> (i32, i32) {
    %c0_i32 = arith.constant 0 : i32
    %c0_i32_0 = arith.constant 0 : i32
    %c0_i32_1 = arith.constant 0 : i32
    return %c0_i32, %c0_i32_0 : i32, i32
  }
  func.func @transform_3(%arg0: i32) -> (i32, i32) {
    %c0_i32 = arith.constant 0 : i32
    %c0_i32_0 = arith.constant 0 : i32
    %c0_i32_1 = arith.constant 0 : i32
    return %c0_i32, %c0_i32_0 : i32, i32
  }
  func.func @transform_4(%arg0: i32) -> (i32, i32) {
    %c0_i32 = arith.constant 0 : i32
    %c0_i32_0 = arith.constant 0 : i32
    %c0_i32_1 = arith.constant 0 : i32
    return %c0_i32, %c0_i32_0 : i32, i32
  }
  func.func @transform_5(%arg0: i32) -> (i32, i32) {
    %c0_i32 = arith.constant 0 : i32
    %c0_i32_0 = arith.constant 0 : i32
    %c0_i32_1 = arith.constant 0 : i32
    return %c0_i32, %c0_i32_0 : i32, i32
  }
  func.func @transform_6(%arg0: i32) -> (i32, i32) {
    %c0_i32 = arith.constant 0 : i32
    %c0_i32_0 = arith.constant 0 : i32
    %c0_i32_1 = arith.constant 0 : i32
    return %c0_i32, %c0_i32_0 : i32, i32
  }
  func.func @transform_7(%arg0: i32) -> (i32, i32) {
    %c0_i32 = arith.constant 0 : i32
    %c0_i32_0 = arith.constant 0 : i32
    %c0_i32_1 = arith.constant 0 : i32
    return %c0_i32, %c0_i32_0 : i32, i32
  }
  func.func @transform_8(%arg0: i32) -> (i32, i32, i32) {
    %c0_i32 = arith.constant 0 : i32
    %c0_i32_0 = arith.constant 0 : i32
    %c0_i32_1 = arith.constant 0 : i32
    return %arg0, %c0_i32, %c0_i32_0 : i32, i32, i32
  }
  func.func @transform_9(%arg0: i32) -> (i32, i32, i32) {
    %c0_i32 = arith.constant 0 : i32
    %c0_i32_0 = arith.constant 0 : i32
    %c0_i32_1 = arith.constant 0 : i32
    return %arg0, %c0_i32, %c0_i32_0 : i32, i32, i32
  }
}

</mosaic_0001>

<llo_original>
// kernel: tpu_custom_call.1
$region0: #{tpu_custom_call.1}
  #allocation0 [shape = 'u32[]', space=smem, size = 0x4, offset = 0x4, fixed_abs, tag = 'smem constant byte address 0x4 - core index']
  #allocation1 [shape = 'u32[144,128]{1,0:T(1,128)}', space=vmem, size = 0x12000, scoped, tag = 'internal scratch']
  %s0 = inlined_call_operand.vmem [shape: bf16[1,32,16], index: 0, kind: input, shape index: {}]
  %s1 = inlined_call_operand.vmem [shape: f32[1,32,32], index: 1, kind: input, shape index: {}]
  %s2 = inlined_call_operand.hbm [shape: bf16[16,32], index: 2, kind: input, shape index: {}]
  %s3 = inlined_call_operand.vmem [shape: f32[1,32], index: 3, kind: input, shape index: {}]
  %s4 = inlined_call_operand.vmem [shape: bf16[32,96], index: 4, kind: input, shape index: {}]
  %s5 = inlined_call_operand.vmem [shape: bf16[32,32], index: 5, kind: input, shape index: {}]
  %s6 = inlined_call_operand.vmem [shape: bf16[64,32], index: 6, kind: input, shape index: {}]
  %s7 = inlined_call_operand.vmem [shape: f32[1,32], index: 7, kind: input, shape index: {}]
  %s8 = inlined_call_operand.hbm [shape: f32[1,32,32], index: 8, kind: output, shape index: {0}]
  %s9 = inlined_call_operand.hbm [shape: f32[1,32,32], index: 9, kind: output, shape index: {1}]
  %10 = xla_tuple %s8, %s9
  %s11 = sld [smem:[#allocation0]]
  $region54: #{tpu_custom_call.1} parent=0
    _
  %s13 = ssub.s32 1, %s11
  %s14 = scalar_select 0, %s13, %s11
  $region1: #{tpu_custom_call.1} parent=0
    #allocation2 [shape = 'u8[4096]{0}', space=vmem, size = 0x1000, scoped, tag = 'input window, operand 2, single buffered']
    #allocation3 [shape = 's32[1]{0}', space=sflag, size = 0x4, scoped, tag = 'scoped memory for tpu_custom_call.1']
    #allocation4 [shape = 's32[1]{0}', space=sflag, size = 0x4, scoped, tag = 'scoped memory for tpu_custom_call.1']
    #allocation5 [shape = 'u8[16384]{0}', space=vmem, size = 0x4000, scoped, tag = 'output window, operand 0, single buffered']
    #allocation6 [shape = 'u8[16384]{0}', space=vmem, size = 0x4000, scoped, tag = 'output window, operand 1, single buffered']
    #allocation7 [shape = 's32[1]{0}', space=sflag, size = 0x4, scoped, tag = 'scoped memory for tpu_custom_call.1']
    %15 = vsyncpa [#allocation3], 0
    %16 = vsyncpa [#allocation4], 0
    %17 = vsyncpa [#allocation7], 0
    // Predicated region
    $region2: #{tpu_custom_call.1} parent=1 // pred_check
      _
    $region3: #{tpu_custom_call.1} parent=1 // pred_check_branch
      %19 = sbr.rel (0) target = $region5
    $region4: #{tpu_custom_call.1} parent=1 // pred_region
      _
    $region5: #{tpu_custom_call.1} parent=1 // pred_fallthru
      _
    // Predicated region
    $region6: #{tpu_custom_call.1} parent=1 // pred_check
      _
    $region7: #{tpu_custom_call.1} parent=1 // pred_check_branch
      %21 = sbr.rel (0) target = $region9
    $region8: #{tpu_custom_call.1} parent=1 // pred_region
      _
    $region9: #{tpu_custom_call.1} parent=1 // pred_fallthru
      _
    // Predicated region
    $region10: #{tpu_custom_call.1} parent=1 // pred_check
      _
    $region11: #{tpu_custom_call.1} parent=1 // pred_check_branch
      %23 = sbr.rel (0) target = $region13
    $region12: #{tpu_custom_call.1} parent=1 // pred_region
      %s25 = ssub.s32 128, 128
      %26 = vsyncadd [#allocation3], %s25
      %s27 = sshll.u32 [#allocation2], 4
      %s28 = int_to_ptr.vmem [resolvable:$true] %s27
      %33 = dma.hbm_to_vmem [thread:$0]  %s2, 128, %s28, [#allocation3], 64, 64, 4
    $region13: #{tpu_custom_call.1} parent=1 // pred_fallthru
      _
    // Predicated region
    $region14: #{tpu_custom_call.1} parent=1 // pred_check
      _
    $region15: #{tpu_custom_call.1} parent=1 // pred_check_branch
      %35 = sbr.rel (0) target = $region17
    $region16: #{tpu_custom_call.1} parent=1 // pred_region
      _
    $region17: #{tpu_custom_call.1} parent=1 // pred_fallthru
      _
    // Predicated region
    $region18: #{tpu_custom_call.1} parent=1 // pred_check
      _
    $region19: #{tpu_custom_call.1} parent=1 // pred_check_branch
      %37 = sbr.rel (0) target = $region21
    $region20: #{tpu_custom_call.1} parent=1 // pred_region
      _
    $region21: #{tpu_custom_call.1} parent=1 // pred_fallthru
      _
    // Predicated region
    $region22: #{tpu_custom_call.1} parent=1 // pred_check
      _
    $region23: #{tpu_custom_call.1} parent=1 // pred_check_branch
      %39 = sbr.rel (0) target = $region25
    $region24: #{tpu_custom_call.1} parent=1 // pred_region
      _
    $region25: #{tpu_custom_call.1} parent=1 // pred_fallthru
      _
    // Predicated region
    $region26: #{tpu_custom_call.1} parent=1 // pred_check
      _
    $region27: #{tpu_custom_call.1} parent=1 // pred_check_branch
      %41 = sbr.rel (0) target = $region29
    $region28: #{tpu_custom_call.1} parent=1 // pred_region
      _
    $region29: #{tpu_custom_call.1} parent=1 // pred_fallthru
      _
    // Predicated region
    $region30: #{tpu_custom_call.1} parent=1 // pred_check
      _
    $region31: #{tpu_custom_call.1} parent=1 // pred_check_branch
      %43 = sbr.rel (0) target = $region33
    $region32: #{tpu_custom_call.1} parent=1 // pred_region
      _
    $region33: #{tpu_custom_call.1} parent=1 // pred_fallthru
      _
    // Predicated region
    $region34: #{tpu_custom_call.1} parent=1 // pred_check
      _
    $region35: #{tpu_custom_call.1} parent=1 // pred_check_branch
      %45 = sbr.rel (0) target = $region37
    $region36: #{tpu_custom_call.1} parent=1 // pred_region
      %46 = dma.done [#allocation3], 128
    $region37: #{tpu_custom_call.1} parent=1 // pred_fallthru
      _
    %v48 = vld [vmem:[%s0] sm:$0xf]
    %v49 = vld [vmem:[%s0 + $0x4] sm:$0xf]
    %v50 = vld [vmem:[%s0 + $0x8] sm:$0xf]
    %v51 = vld [vmem:[%s0 + $0xc] sm:$0xf]
    %v52 = vld [vmem:[%s1] sm:$0xff]
    %v53 = vld [vmem:[%s1 + $0x8] sm:$0xff]
    %v54 = vld [vmem:[%s1 + $0x10] sm:$0xff]
    %v55 = vld [vmem:[%s1 + $0x18] sm:$0xff]
    %vm56 = vcmp.gt.f32.partialorder %v52, 0.5
    %vm57 = vcmp.gt.f32.partialorder %v53, 0.5
    %vm58 = vcmp.gt.f32.partialorder %v54, 0.5
    %vm59 = vcmp.gt.f32.partialorder %v55, 0.5
    %v60 = vld [vmem:[#allocation2] sm:$0xf]
    %v61 = vld [vmem:[#allocation2 + $0x4] sm:$0xf]
    %v62 = vld [vmem:[%s4] sm:$0xf]
    %v63 = vld [vmem:[%s4 + $0x4] sm:$0xf]
    %v64 = vld [vmem:[%s4 + $0x8] sm:$0xf]
    %v65 = vld [vmem:[%s4 + $0xc] sm:$0xf]
    %v66 = vld [vmem:[%s5] sm:$0xf]
    %v67 = vld [vmem:[%s5 + $0x4] sm:$0xf]
    %v68 = vld [vmem:[%s5 + $0x8] sm:$0xf]
    %v69 = vld [vmem:[%s5 + $0xc] sm:$0xf]
    %v70 = vld [vmem:[%s6] sm:$0xf]
    %v71 = vld [vmem:[%s6 + $0x4] sm:$0xf]
    %v72 = vld [vmem:[%s6 + $0x8] sm:$0xf]
    %v73 = vld [vmem:[%s6 + $0xc] sm:$0xf]
    %v74 = vld [vmem:[%s6 + $0x10] sm:$0xf]
    %v75 = vld [vmem:[%s6 + $0x14] sm:$0xf]
    %v76 = vld [vmem:[%s6 + $0x18] sm:$0xf]
    %v77 = vld [vmem:[%s6 + $0x1c] sm:$0xf]
    %v78 = vld [vmem:[%s3] sm:$0x1]
    %v79 = vld [vmem:[%s7] sm:$0x1]
    %v81 = vlaneseq
    %v82 = vshrl.u32 %v81, 7
    %v83 = vsub.s32 0, %v82
    %v84 = vrot.slane %v79, %v83
    %v87 = vlaneseq
    %v88 = vshrl.u32 %v87, 7
    %v89 = vsub.s32 0, %v88
    %v90 = vrot.slane %v78, %v89
    %v96 = vunpack.c.l.b16 %v48
    %v97 = vunpack.c.l.b16 %v49
    %v98 = vunpack.c.l.b16 %v50
    %v99 = vunpack.c.l.b16 %v51
    %v100 = vpack.c.b16 %v97, %v96
    %v101 = vpack.c.b16 %v99, %v98
    %v104 = vunpack.c.l.b16 %v60
    %v105 = vunpack.c.l.b16 %v61
    %v106 = vpack.c.b16 %v105, %v104
    %vm108 = vcmask 130048
    %v110 = vsel %vm108, %v100, 0
    %v113 = vsel %vm108, %v101, 0
    %115 = vmatprep.subr.bf16.mxu0 0
    %116 = vmatpush1.bf16.msra.mxu0 %v106
    %117 = vmatprep.subr.bf16.mxu0 0
    %118 = vmatpush1.bf16.msra.mxu0 0
    %119 = vmatprep.subr.bf16.mxu0 0
    %120 = vmatpush1.bf16.msra.mxu0 0
    %121 = vmatprep.subr.bf16.mxu0 0
    %122 = vmatpush1.bf16.msra.mxu0 0
    %123 = vmatprep.subr.bf16.mxu0 0
    %124 = vmatpush1.bf16.msra.mxu0 0
    %125 = vmatprep.subr.bf16.mxu0 0
    %126 = vmatpush1.bf16.msra.mxu0 0
    %127 = vmatprep.subr.bf16.mxu0 0
    %128 = vmatpush1.bf16.msra.mxu0 0
    %129 = vmatprep.subr.bf16.mxu0 0
    %130 = vmatpush1.bf16.msra.mxu0 0
    %131 = vmatprep.subr.bf16.mxu0 0
    %132 = vmatpush1.bf16.msra.mxu0 0
    %133 = vmatprep.subr.bf16.mxu0 0
    %134 = vmatpush1.bf16.msra.mxu0 0
    %135 = vmatprep.subr.bf16.mxu0 0
    %136 = vmatpush1.bf16.msra.mxu0 0
    %137 = vmatprep.subr.bf16.mxu0 0
    %138 = vmatpush1.bf16.msra.mxu0 0
    %139 = vmatprep.subr.bf16.mxu0 0
    %140 = vmatpush1.bf16.msra.mxu0 0
    %141 = vmatprep.subr.bf16.mxu0 0
    %142 = vmatpush1.bf16.msra.mxu0 0
    %143 = vmatprep.subr.bf16.mxu0 0
    %144 = vmatpush1.bf16.msra.mxu0 0
    %145 = vmatprep.subr.bf16.mxu0 0
    %146 = vmatpush1.bf16.msra.mxu0 0
    %147 = vmatprep.mubr.bf16.mxu0 0
    %148 = vmatmul.mubr.bf16.gmra.mrb[0].mxu0 %v110
    %v149 = vpop.f32.mrb[0].mxu0
    %v150 = vadd.f32 %v90, %v149
    %v151 = vpop.f32.mrb[0].mxu0
    %v152 = vpop.f32.mrb[0].mxu0
    %v153 = vadd.f32 %v90, %v152
    %v154 = vpop.f32.mrb[0].mxu0
    %155 = vmatprep.mubr.bf16.mxu0 0
    %156 = vmatmul.mubr.bf16.gmra.mrb[0].mxu0 %v113
    %v157 = vpop.f32.mrb[0].mxu0
    %v158 = vadd.f32 %v90, %v157
    %v159 = vpop.f32.mrb[0].mxu0
    %v160 = vpop.f32.mrb[0].mxu0
    %v161 = vadd.f32 %v90, %v160
    %v162 = vpop.f32.mrb[0].mxu0
    %163 = vdwg.mxu0
    %v164 = vmax.f32 %v150, 0.0
    %v165 = vmax.f32 %v153, 0.0
    %v166 = vmax.f32 %v158, 0.0
    %v167 = vmax.f32 %v161, 0.0
    %v168 = vpack.c.bf16 %v165, %v164
    %v169 = vpack.c.bf16 %v167, %v166
    %v174 = vunpack.c.l.b16 %v62
    %v175 = vunpack.c.l.b16 %v63
    %v176 = vunpack.c.l.b16 %v64
    %v177 = vunpack.c.l.b16 %v65
    %v178 = vpack.c.b16 %v175, %v174
    %v179 = vpack.c.b16 %v177, %v176
    %vm182 = vcmask 261120
    %v184 = vsel %vm182, %v168, 0
    %v187 = vsel %vm182, %v169, 0
    %189 = vmatprep.subr.bf16.mxu0 0
    %190 = vmatpush1.bf16.msra.mxu0 %v178
    %191 = vmatprep.subr.bf16.mxu0 0
    %192 = vmatpush1.bf16.msra.mxu0 %v179
    %193 = vmatprep.subr.bf16.mxu0 0
    %194 = vmatpush1.bf16.msra.mxu0 0
    %195 = vmatprep.subr.bf16.mxu0 0
    %196 = vmatpush1.bf16.msra.mxu0 0
    %197 = vmatprep.subr.bf16.mxu0 0
    %198 = vmatpush1.bf16.msra.mxu0 0
    %199 = vmatprep.subr.bf16.mxu0 0
    %200 = vmatpush1.bf16.msra.mxu0 0
    %201 = vmatprep.subr.bf16.mxu0 0
    %202 = vmatpush1.bf16.msra.mxu0 0
    %203 = vmatprep.subr.bf16.mxu0 0
    %204 = vmatpush1.bf16.msra.mxu0 0
    %205 = vmatprep.subr.bf16.mxu0 0
    %206 = vmatpush1.bf16.msra.mxu0 0
    %207 = vmatprep.subr.bf16.mxu0 0
    %208 = vmatpush1.bf16.msra.mxu0 0
    %209 = vmatprep.subr.bf16.mxu0 0
    %210 = vmatpush1.bf16.msra.mxu0 0
    %211 = vmatprep.subr.bf16.mxu0 0
    %212 = vmatpush1.bf16.msra.mxu0 0
    %213 = vmatprep.subr.bf16.mxu0 0
    %214 = vmatpush1.bf16.msra.mxu0 0
    %215 = vmatprep.subr.bf16.mxu0 0
    %216 = vmatpush1.bf16.msra.mxu0 0
    %217 = vmatprep.subr.bf16.mxu0 0
    %218 = vmatpush1.bf16.msra.mxu0 0
    %219 = vmatprep.subr.bf16.mxu0 0
    %220 = vmatpush1.bf16.msra.mxu0 0
    %221 = vmatprep.mubr.bf16.mxu0 0
    %222 = vmatmul.mubr.bf16.gmra.mrb[0].mxu0 %v184
    %v223 = vpop.f32.mrb[0].mxu0
    %v224 = vadd.f32 0.0, %v223
    %v225 = vpop.f32.mrb[0].mxu0
    %v226 = vpop.f32.mrb[0].mxu0
    %v227 = vadd.f32 0.0, %v226
    %v228 = vpop.f32.mrb[0].mxu0
    %229 = vmatprep.mubr.bf16.mxu0 0
    %230 = vmatmul.mubr.bf16.gmra.mrb[0].mxu0 %v187
    %v231 = vpop.f32.mrb[0].mxu0
    %v232 = vadd.f32 0.0, %v231
    %v233 = vpop.f32.mrb[0].mxu0
    %v234 = vpop.f32.mrb[0].mxu0
    %v235 = vadd.f32 0.0, %v234
    %v236 = vpop.f32.mrb[0].mxu0
    %237 = vdwg.mxu0
    %v238 = vpack.c.bf16 %v227, %v224
    %v239 = vpack.c.bf16 %v235, %v232
    %242 = vrot.lane.b32.xlu0 %v238, 96
    %v243 = vpop.permute.xlu0 %242
    %244 = vrot.lane.b32.xlu0 %v239, 96
    %v245 = vpop.permute.xlu0 %244
    %v247 = vsel %vm182, %v238, 0
    %v250 = vsel %vm182, %v239, 0
    %v253 = vsel %vm182, %v243, 0
    %v256 = vsel %vm182, %v245, 0
    %258 = vmatprep.subr.bf16.mxu0 0
    %259 = vmatpush1.bf16.xpose.msra.mxu0 %v253
    %260 = vmatprep.subr.bf16.mxu0 0
    %261 = vmatpush1.bf16.xpose.msra.mxu0 %v256
    %262 = vmatprep.subr.bf16.mxu0 0
    %263 = vmatpush1.bf16.xpose.msra.mxu0 0
    %264 = vmatprep.subr.bf16.mxu0 0
    %265 = vmatpush1.bf16.xpose.msra.mxu0 0
    %266 = vmatprep.subr.bf16.mxu0 0
    %267 = vmatpush1.bf16.xpose.msra.mxu0 0
    %268 = vmatprep.subr.bf16.mxu0 0
    %269 = vmatpush1.bf16.xpose.msra.mxu0 0
    %270 = vmatprep.subr.bf16.mxu0 0
    %271 = vmatpush1.bf16.xpose.msra.mxu0 0
    %272 = vmatprep.subr.bf16.mxu0 0
    %273 = vmatpush1.bf16.xpose.msra.mxu0 0
    %274 = vmatprep.subr.bf16.mxu0 0
    %275 = vmatpush1.bf16.xpose.msra.mxu0 0
    %276 = vmatprep.subr.bf16.mxu0 0
    %277 = vmatpush1.bf16.xpose.msra.mxu0 0
    %278 = vmatprep.subr.bf16.mxu0 0
    %279 = vmatpush1.bf16.xpose.msra.mxu0 0
    %280 = vmatprep.subr.bf16.mxu0 0
    %281 = vmatpush1.bf16.xpose.msra.mxu0 0
    %282 = vmatprep.subr.bf16.mxu0 0
    %283 = vmatpush1.bf16.xpose.msra.mxu0 0
    %284 = vmatprep.subr.bf16.mxu0 0
    %285 = vmatpush1.bf16.xpose.msra.mxu0 0
    %286 = vmatprep.subr.bf16.mxu0 0
    %287 = vmatpush1.bf16.xpose.msra.mxu0 0
    %288 = vmatprep.subr.bf16.mxu0 0
    %289 = vmatpush1.bf16.xpose.msra.mxu0 0
    %290 = vmatprep.mubr.bf16.mxu0 0
    %291 = vmatmul.mubr.bf16.gmra.mrb[0].mxu0 %v247
    %v292 = vpop.f32.mrb[0].mxu0
    %v293 = vadd.f32 0.0, %v292
    %v294 = vpop.f32.mrb[0].mxu0
    %v295 = vpop.f32.mrb[0].mxu0
    %v296 = vadd.f32 0.0, %v295
    %v297 = vpop.f32.mrb[0].mxu0
    %298 = vmatprep.mubr.bf16.mxu0 0
    %299 = vmatmul.mubr.bf16.gmra.mrb[0].mxu0 %v250
    %v300 = vpop.f32.mrb[0].mxu0
    %v301 = vadd.f32 0.0, %v300
    %v302 = vpop.f32.mrb[0].mxu0
    %v303 = vpop.f32.mrb[0].mxu0
    %v304 = vadd.f32 0.0, %v303
    %v305 = vpop.f32.mrb[0].mxu0
    %306 = vdwg.mxu0
    %v307 = vsel %vm56, -1e+30, %v293
    %v308 = vsel %vm57, -1e+30, %v296
    %v309 = vsel %vm58, -1e+30, %v301
    %v310 = vsel %vm59, -1e+30, %v304
    %v311 = vsel %vm182, %v307, -inf
    %312 = vmax.xlane.f32.xlu0 %v311
    %v313 = vpop.xlane.xlu0 %312
    %v314 = vsel %vm182, %v308, -inf
    %315 = vmax.xlane.f32.xlu0 %v314
    %v316 = vpop.xlane.xlu0 %315
    %v317 = vsel %vm182, %v309, -inf
    %318 = vmax.xlane.f32.xlu0 %v317
    %v319 = vpop.xlane.xlu0 %318
    %v320 = vsel %vm182, %v310, -inf
    %321 = vmax.xlane.f32.xlu0 %v320
    %v322 = vpop.xlane.xlu0 %321
    %v323 = vsub.f32 %v307, %v313
    %v324 = vsub.f32 %v308, %v316
    %v325 = vsub.f32 %v309, %v319
    %v326 = vsub.f32 %v310, %v322
    %v327 = vmul.f32 %v323, 1.442695
    %v328 = vpow.pop %v327
    %v329 = vmul.f32 %v324, 1.442695
    %v330 = vpow.pop %v329
    %v331 = vmul.f32 %v325, 1.442695
    %v332 = vpow.pop %v331
    %v333 = vmul.f32 %v326, 1.442695
    %v334 = vpow.pop %v333
    %v335 = vsel %vm182, %v328, 0.0
    %336 = vadd.xlane.f32.xlu0 %v335
    %v337 = vpop.xlane.xlu0 %336
    %v338 = vsel %vm182, %v330, 0.0
    %339 = vadd.xlane.f32.xlu0 %v338
    %v340 = vpop.xlane.xlu0 %339
    %v341 = vsel %vm182, %v332, 0.0
    %342 = vadd.xlane.f32.xlu0 %v341
    %v343 = vpop.xlane.xlu0 %342
    %v344 = vsel %vm182, %v334, 0.0
    %345 = vadd.xlane.f32.xlu0 %v344
    %v346 = vpop.xlane.xlu0 %345
    %v347 = vrcp.pop %v337
    %v348 = vmul.f32 %v328, %v347
    %v349 = vrcp.pop %v340
    %v350 = vmul.f32 %v330, %v349
    %v351 = vrcp.pop %v343
    %v352 = vmul.f32 %v332, %v351
    %v353 = vrcp.pop %v346
    %v354 = vmul.f32 %v334, %v353
    %v355 = vsel %vm56, 0.0, %v348
    %v356 = vsel %vm57, 0.0, %v350
    %v357 = vsel %vm58, 0.0, %v352
    %v358 = vsel %vm59, 0.0, %v354
    %v359 = vpack.c.bf16 %v356, %v355
    %v360 = vpack.c.bf16 %v358, %v357
    %361 = vrot.lane.b32.xlu0 %v238, 64
    %v362 = vpop.permute.xlu0 %361
    %363 = vrot.lane.b32.xlu0 %v239, 64
    %v364 = vpop.permute.xlu0 %363
    %v368 = vsel %vm182, %v359, 0
    %v371 = vsel %vm182, %v360, 0
    %373 = vmatprep.subr.bf16.mxu0 0
    %374 = vmatpush1.bf16.msra.mxu0 %v362
    %375 = vmatprep.subr.bf16.mxu0 0
    %376 = vmatpush1.bf16.msra.mxu0 %v364
    %377 = vmatprep.subr.bf16.mxu0 0
    %378 = vmatpush1.bf16.msra.mxu0 0
    %379 = vmatprep.subr.bf16.mxu0 0
    %380 = vmatpush1.bf16.msra.mxu0 0
    %381 = vmatprep.subr.bf16.mxu0 0
    %382 = vmatpush1.bf16.msra.mxu0 0
    %383 = vmatprep.subr.bf16.mxu0 0
    %384 = vmatpush1.bf16.msra.mxu0 0
    %385 = vmatprep.subr.bf16.mxu0 0
    %386 = vmatpush1.bf16.msra.mxu0 0
    %387 = vmatprep.subr.bf16.mxu0 0
    %388 = vmatpush1.bf16.msra.mxu0 0
    %389 = vmatprep.subr.bf16.mxu0 0
    %390 = vmatpush1.bf16.msra.mxu0 0
    %391 = vmatprep.subr.bf16.mxu0 0
    %392 = vmatpush1.bf16.msra.mxu0 0
    %393 = vmatprep.subr.bf16.mxu0 0
    %394 = vmatpush1.bf16.msra.mxu0 0
    %395 = vmatprep.subr.bf16.mxu0 0
    %396 = vmatpush1.bf16.msra.mxu0 0
    %397 = vmatprep.subr.bf16.mxu0 0
    %398 = vmatpush1.bf16.msra.mxu0 0
    %399 = vmatprep.subr.bf16.mxu0 0
    %400 = vmatpush1.bf16.msra.mxu0 0
    %401 = vmatprep.subr.bf16.mxu0 0
    %402 = vmatpush1.bf16.msra.mxu0 0
    %403 = vmatprep.subr.bf16.mxu0 0
    %404 = vmatpush1.bf16.msra.mxu0 0
    %405 = vmatprep.mubr.bf16.mxu0 0
    %406 = vmatmul.mubr.bf16.gmra.mrb[0].mxu0 %v368
    %v407 = vpop.f32.mrb[0].mxu0
    %v408 = vadd.f32 0.0, %v407
    %v409 = vpop.f32.mrb[0].mxu0
    %v410 = vpop.f32.mrb[0].mxu0
    %v411 = vadd.f32 0.0, %v410
    %v412 = vpop.f32.mrb[0].mxu0
    %413 = vmatprep.mubr.bf16.mxu0 0
    %414 = vmatmul.mubr.bf16.gmra.mrb[0].mxu0 %v371
    %v415 = vpop.f32.mrb[0].mxu0
    %v416 = vadd.f32 0.0, %v415
    %v417 = vpop.f32.mrb[0].mxu0
    %v418 = vpop.f32.mrb[0].mxu0
    %v419 = vadd.f32 0.0, %v418
    %v420 = vpop.f32.mrb[0].mxu0
    %421 = vdwg.mxu0
    %v422 = vpack.c.bf16 %v411, %v408
    %v423 = vpack.c.bf16 %v419, %v416
    %v428 = vunpack.c.l.b16 %v66
    %v429 = vunpack.c.l.b16 %v67
    %v430 = vunpack.c.l.b16 %v68
    %v431 = vunpack.c.l.b16 %v69
    %v432 = vpack.c.b16 %v429, %v428
    %v433 = vpack.c.b16 %v431, %v430
    %v437 = vsel %vm182, %v422, 0
    %v440 = vsel %vm182, %v423, 0
    %442 = vmatprep.subr.bf16.mxu0 0
    %443 = vmatpush1.bf16.msra.mxu0 %v432
    %444 = vmatprep.subr.bf16.mxu0 0
    %445 = vmatpush1.bf16.msra.mxu0 %v433
    %446 = vmatprep.subr.bf16.mxu0 0
    %447 = vmatpush1.bf16.msra.mxu0 0
    %448 = vmatprep.subr.bf16.mxu0 0
    %449 = vmatpush1.bf16.msra.mxu0 0
    %450 = vmatprep.subr.bf16.mxu0 0
    %451 = vmatpush1.bf16.msra.mxu0 0
    %452 = vmatprep.subr.bf16.mxu0 0
    %453 = vmatpush1.bf16.msra.mxu0 0
    %454 = vmatprep.subr.bf16.mxu0 0
    %455 = vmatpush1.bf16.msra.mxu0 0
    %456 = vmatprep.subr.bf16.mxu0 0
    %457 = vmatpush1.bf16.msra.mxu0 0
    %458 = vmatprep.subr.bf16.mxu0 0
    %459 = vmatpush1.bf16.msra.mxu0 0
    %460 = vmatprep.subr.bf16.mxu0 0
    %461 = vmatpush1.bf16.msra.mxu0 0
    %462 = vmatprep.subr.bf16.mxu0 0
    %463 = vmatpush1.bf16.msra.mxu0 0
    %464 = vmatprep.subr.bf16.mxu0 0
    %465 = vmatpush1.bf16.msra.mxu0 0
    %466 = vmatprep.subr.bf16.mxu0 0
    %467 = vmatpush1.bf16.msra.mxu0 0
    %468 = vmatprep.subr.bf16.mxu0 0
    %469 = vmatpush1.bf16.msra.mxu0 0
    %470 = vmatprep.subr.bf16.mxu0 0
    %471 = vmatpush1.bf16.msra.mxu0 0
    %472 = vmatprep.subr.bf16.mxu0 0
    %473 = vmatpush1.bf16.msra.mxu0 0
    %474 = vmatprep.mubr.bf16.mxu0 0
    %475 = vmatmul.mubr.bf16.gmra.mrb[0].mxu0 %v437
    %v476 = vpop.f32.mrb[0].mxu0
    %v477 = vadd.f32 0.0, %v476
    %v478 = vpop.f32.mrb[0].mxu0
    %v479 = vpop.f32.mrb[0].mxu0
    %v480 = vadd.f32 0.0, %v479
    %v481 = vpop.f32.mrb[0].mxu0
    %482 = vmatprep.mubr.bf16.mxu0 0
    %483 = vmatmul.mubr.bf16.gmra.mrb[0].mxu0 %v440
    %v484 = vpop.f32.mrb[0].mxu0
    %v485 = vadd.f32 0.0, %v484
    %v486 = vpop.f32.mrb[0].mxu0
    %v487 = vpop.f32.mrb[0].mxu0
    %v488 = vadd.f32 0.0, %v487
    %v489 = vpop.f32.mrb[0].mxu0
    %490 = vdwg.mxu0
    %495 = vrot.lane.b32.xlu0 %v477, 32
    %v496 = vpop.permute.xlu0 %495
    %497 = vrot.lane.b32.xlu0 %v480, 32
    %v498 = vpop.permute.xlu0 %497
    %499 = vrot.lane.b32.xlu0 %v485, 32
    %v500 = vpop.permute.xlu0 %499
    %501 = vrot.lane.b32.xlu0 %v488, 32
    %v502 = vpop.permute.xlu0 %501
    %v507 = vsel %vm182, %v164, %v496
    %v508 = vsel %vm182, %v165, %v498
    %v509 = vsel %vm182, %v166, %v500
    %v510 = vsel %vm182, %v167, %v502
    %v511 = vpack.c.bf16 %v508, %v507
    %v512 = vpack.c.bf16 %v510, %v509
    %v521 = vunpack.c.l.b16 %v70
    %v522 = vunpack.c.l.b16 %v71
    %v523 = vunpack.c.l.b16 %v72
    %v524 = vunpack.c.l.b16 %v73
    %v525 = vunpack.c.l.b16 %v74
    %v526 = vunpack.c.l.b16 %v75
    %v527 = vunpack.c.l.b16 %v76
    %v528 = vunpack.c.l.b16 %v77
    %v529 = vpack.c.b16 %v522, %v521
    %v530 = vpack.c.b16 %v524, %v523
    %v531 = vpack.c.b16 %v526, %v525
    %v532 = vpack.c.b16 %v528, %v527
    %vm537 = vcmask 523264
    %v539 = vsel %vm537, %v511, 0
    %v542 = vsel %vm537, %v512, 0
    %544 = vmatprep.subr.bf16.mxu0 0
    %545 = vmatpush1.bf16.msra.mxu0 %v529
    %546 = vmatprep.subr.bf16.mxu0 0
    %547 = vmatpush1.bf16.msra.mxu0 %v530
    %548 = vmatprep.subr.bf16.mxu0 0
    %549 = vmatpush1.bf16.msra.mxu0 %v531
    %550 = vmatprep.subr.bf16.mxu0 0
    %551 = vmatpush1.bf16.msra.mxu0 %v532
    %552 = vmatprep.subr.bf16.mxu0 0
    %553 = vmatpush1.bf16.msra.mxu0 0
    %554 = vmatprep.subr.bf16.mxu0 0
    %555 = vmatpush1.bf16.msra.mxu0 0
    %556 = vmatprep.subr.bf16.mxu0 0
    %557 = vmatpush1.bf16.msra.mxu0 0
    %558 = vmatprep.subr.bf16.mxu0 0
    %559 = vmatpush1.bf16.msra.mxu0 0
    %560 = vmatprep.subr.bf16.mxu0 0
    %561 = vmatpush1.bf16.msra.mxu0 0
    %562 = vmatprep.subr.bf16.mxu0 0
    %563 = vmatpush1.bf16.msra.mxu0 0
    %564 = vmatprep.subr.bf16.mxu0 0
    %565 = vmatpush1.bf16.msra.mxu0 0
    %566 = vmatprep.subr.bf16.mxu0 0
    %567 = vmatpush1.bf16.msra.mxu0 0
    %568 = vmatprep.subr.bf16.mxu0 0
    %569 = vmatpush1.bf16.msra.mxu0 0
    %570 = vmatprep.subr.bf16.mxu0 0
    %571 = vmatpush1.bf16.msra.mxu0 0
    %572 = vmatprep.subr.bf16.mxu0 0
    %573 = vmatpush1.bf16.msra.mxu0 0
    %574 = vmatprep.subr.bf16.mxu0 0
    %575 = vmatpush1.bf16.msra.mxu0 0
    %576 = vmatprep.mubr.bf16.mxu0 0
    %577 = vmatmul.mubr.bf16.gmra.mrb[0].mxu0 %v539
    %v578 = vpop.f32.mrb[0].mxu0
    %v579 = vadd.f32 %v84, %v578
    %v580 = vpop.f32.mrb[0].mxu0
    %v581 = vpop.f32.mrb[0].mxu0
    %v582 = vadd.f32 %v84, %v581
    %v583 = vpop.f32.mrb[0].mxu0
    %584 = vmatprep.mubr.bf16.mxu0 0
    %585 = vmatmul.mubr.bf16.gmra.mrb[0].mxu0 %v542
    %v586 = vpop.f32.mrb[0].mxu0
    %v587 = vadd.f32 %v84, %v586
    %v588 = vpop.f32.mrb[0].mxu0
    %v589 = vpop.f32.mrb[0].mxu0
    %v590 = vadd.f32 %v84, %v589
    %v591 = vpop.f32.mrb[0].mxu0
    %592 = vdwg.mxu0
    %v593 = vmax.f32 %v579, 0.0
    %v594 = vmax.f32 %v582, 0.0
    %v595 = vmax.f32 %v587, 0.0
    %v596 = vmax.f32 %v590, 0.0
    %v597 = vpack.c.bf16 %v594, %v593
    %v598 = vpack.c.bf16 %v596, %v595
    %v600 = vsel %vm182, %v597, 0
    %v603 = vsel %vm182, %v598, 0
    %605 = vmatprep.subr.bf16.mxu0 0
    %606 = vmatpush1.bf16.msra.mxu0 %v178
    %607 = vmatprep.subr.bf16.mxu0 0
    %608 = vmatpush1.bf16.msra.mxu0 %v179
    %609 = vmatprep.subr.bf16.mxu0 0
    %610 = vmatpush1.bf16.msra.mxu0 0
    %611 = vmatprep.subr.bf16.mxu0 0
    %612 = vmatpush1.bf16.msra.mxu0 0
    %613 = vmatprep.subr.bf16.mxu0 0
    %614 = vmatpush1.bf16.msra.mxu0 0
    %615 = vmatprep.subr.bf16.mxu0 0
    %616 = vmatpush1.bf16.msra.mxu0 0
    %617 = vmatprep.subr.bf16.mxu0 0
    %618 = vmatpush1.bf16.msra.mxu0 0
    %619 = vmatprep.subr.bf16.mxu0 0
    %620 = vmatpush1.bf16.msra.mxu0 0
    %621 = vmatprep.subr.bf16.mxu0 0
    %622 = vmatpush1.bf16.msra.mxu0 0
    %623 = vmatprep.subr.bf16.mxu0 0
    %624 = vmatpush1.bf16.msra.mxu0 0
    %625 = vmatprep.subr.bf16.mxu0 0
    %626 = vmatpush1.bf16.msra.mxu0 0
    %627 = vmatprep.subr.bf16.mxu0 0
    %628 = vmatpush1.bf16.msra.mxu0 0
    %629 = vmatprep.subr.bf16.mxu0 0
    %630 = vmatpush1.bf16.msra.mxu0 0
    %631 = vmatprep.subr.bf16.mxu0 0
    %632 = vmatpush1.bf16.msra.mxu0 0
    %633 = vmatprep.subr.bf16.mxu0 0
    %634 = vmatpush1.bf16.msra.mxu0 0
    %635 = vmatprep.subr.bf16.mxu0 0
    %636 = vmatpush1.bf16.msra.mxu0 0
    %637 = vmatprep.mubr.bf16.mxu0 0
    %638 = vmatmul.mubr.bf16.gmra.mrb[0].mxu0 %v600
    %v639 = vpop.f32.mrb[0].mxu0
    %v640 = vadd.f32 0.0, %v639
    %v641 = vpop.f32.mrb[0].mxu0
    %v642 = vpop.f32.mrb[0].mxu0
    %v643 = vadd.f32 0.0, %v642
    %v644 = vpop.f32.mrb[0].mxu0
    %645 = vmatprep.mubr.bf16.mxu0 0
    %646 = vmatmul.mubr.bf16.gmra.mrb[0].mxu0 %v603
    %v647 = vpop.f32.mrb[0].mxu0
    %v648 = vadd.f32 0.0, %v647
    %v649 = vpop.f32.mrb[0].mxu0
    %v650 = vpop.f32.mrb[0].mxu0
    %v651 = vadd.f32 0.0, %v650
    %v652 = vpop.f32.mrb[0].mxu0
    %653 = vdwg.mxu0
    %v654 = vpack.c.bf16 %v643, %v640
    %v655 = vpack.c.bf16 %v651, %v648
    %658 = vrot.lane.b32.xlu0 %v654, 96
    %v659 = vpop.permute.xlu0 %658
    %660 = vrot.lane.b32.xlu0 %v655, 96
    %v661 = vpop.permute.xlu0 %660
    %v663 = vsel %vm182, %v654, 0
    %v666 = vsel %vm182, %v655, 0
    %v669 = vsel %vm182, %v659, 0
    %v672 = vsel %vm182, %v661, 0
    %674 = vmatprep.subr.bf16.mxu0 0
    %675 = vmatpush1.bf16.xpose.msra.mxu0 %v669
    %676 = vmatprep.subr.bf16.mxu0 0
    %677 = vmatpush1.bf16.xpose.msra.mxu0 %v672
    %678 = vmatprep.subr.bf16.mxu0 0
    %679 = vmatpush1.bf16.xpose.msra.mxu0 0
    %680 = vmatprep.subr.bf16.mxu0 0
    %681 = vmatpush1.bf16.xpose.msra.mxu0 0
    %682 = vmatprep.subr.bf16.mxu0 0
    %683 = vmatpush1.bf16.xpose.msra.mxu0 0
    %684 = vmatprep.subr.bf16.mxu0 0
    %685 = vmatpush1.bf16.xpose.msra.mxu0 0
    %686 = vmatprep.subr.bf16.mxu0 0
    %687 = vmatpush1.bf16.xpose.msra.mxu0 0
    %688 = vmatprep.subr.bf16.mxu0 0
    %689 = vmatpush1.bf16.xpose.msra.mxu0 0
    %690 = vmatprep.subr.bf16.mxu0 0
    %691 = vmatpush1.bf16.xpose.msra.mxu0 0
    %692 = vmatprep.subr.bf16.mxu0 0
    %693 = vmatpush1.bf16.xpose.msra.mxu0 0
    %694 = vmatprep.subr.bf16.mxu0 0
    %695 = vmatpush1.bf16.xpose.msra.mxu0 0
    %696 = vmatprep.subr.bf16.mxu0 0
    %697 = vmatpush1.bf16.xpose.msra.mxu0 0
    %698 = vmatprep.subr.bf16.mxu0 0
    %699 = vmatpush1.bf16.xpose.msra.mxu0 0
    %700 = vmatprep.subr.bf16.mxu0 0
    %701 = vmatpush1.bf16.xpose.msra.mxu0 0
    %702 = vmatprep.subr.bf16.mxu0 0
    %703 = vmatpush1.bf16.xpose.msra.mxu0 0
    %704 = vmatprep.subr.bf16.mxu0 0
    %705 = vmatpush1.bf16.xpose.msra.mxu0 0
    %706 = vmatprep.mubr.bf16.mxu0 0
    %707 = vmatmul.mubr.bf16.gmra.mrb[0].mxu0 %v663
    %v708 = vpop.f32.mrb[0].mxu0
    %v709 = vadd.f32 0.0, %v708
    %v710 = vpop.f32.mrb[0].mxu0
    %v711 = vpop.f32.mrb[0].mxu0
    %v712 = vadd.f32 0.0, %v711
    %v713 = vpop.f32.mrb[0].mxu0
    %714 = vmatprep.mubr.bf16.mxu0 0
    %715 = vmatmul.mubr.bf16.gmra.mrb[0].mxu0 %v666
    %v716 = vpop.f32.mrb[0].mxu0
    %v717 = vadd.f32 0.0, %v716
    %v718 = vpop.f32.mrb[0].mxu0
    %v719 = vpop.f32.mrb[0].mxu0
    %v720 = vadd.f32 0.0, %v719
    %v721 = vpop.f32.mrb[0].mxu0
    %722 = vdwg.mxu0
    %v723 = vsel %vm56, -1e+30, %v709
    %v724 = vsel %vm57, -1e+30, %v712
    %v725 = vsel %vm58, -1e+30, %v717
    %v726 = vsel %vm59, -1e+30, %v720
    %v727 = vsel %vm182, %v723, -inf
    %728 = vmax.xlane.f32.xlu0 %v727
    %v729 = vpop.xlane.xlu0 %728
    %v730 = vsel %vm182, %v724, -inf
    %731 = vmax.xlane.f32.xlu0 %v730
    %v732 = vpop.xlane.xlu0 %731
    %v733 = vsel %vm182, %v725, -inf
    %734 = vmax.xlane.f32.xlu0 %v733
    %v735 = vpop.xlane.xlu0 %734
    %v736 = vsel %vm182, %v726, -inf
    %737 = vmax.xlane.f32.xlu0 %v736
    %v738 = vpop.xlane.xlu0 %737
    %v739 = vsub.f32 %v723, %v729
    %v740 = vsub.f32 %v724, %v732
    %v741 = vsub.f32 %v725, %v735
    %v742 = vsub.f32 %v726, %v738
    %v743 = vmul.f32 %v739, 1.442695
    %v744 = vpow.pop %v743
    %v745 = vmul.f32 %v740, 1.442695
    %v746 = vpow.pop %v745
    %v747 = vmul.f32 %v741, 1.442695
    %v748 = vpow.pop %v747
    %v749 = vmul.f32 %v742, 1.442695
    %v750 = vpow.pop %v749
    %v751 = vsel %vm182, %v744, 0.0
    %752 = vadd.xlane.f32.xlu0 %v751
    %v753 = vpop.xlane.xlu0 %752
    %v754 = vsel %vm182, %v746, 0.0
    %755 = vadd.xlane.f32.xlu0 %v754
    %v756 = vpop.xlane.xlu0 %755
    %v757 = vsel %vm182, %v748, 0.0
    %758 = vadd.xlane.f32.xlu0 %v757
    %v759 = vpop.xlane.xlu0 %758
    %v760 = vsel %vm182, %v750, 0.0
    %761 = vadd.xlane.f32.xlu0 %v760
    %v762 = vpop.xlane.xlu0 %761
    %v763 = vrcp.pop %v753
    %v764 = vmul.f32 %v744, %v763
    %v765 = vrcp.pop %v756
    %v766 = vmul.f32 %v746, %v765
    %v767 = vrcp.pop %v759
    %v768 = vmul.f32 %v748, %v767
    %v769 = vrcp.pop %v762
    %v770 = vmul.f32 %v750, %v769
    %v771 = vsel %vm56, 0.0, %v764
    %v772 = vsel %vm57, 0.0, %v766
    %v773 = vsel %vm58, 0.0, %v768
    %v774 = vsel %vm59, 0.0, %v770
    %v775 = vpack.c.bf16 %v772, %v771
    %v776 = vpack.c.bf16 %v774, %v773
    %777 = vrot.lane.b32.xlu0 %v654, 64
    %v778 = vpop.permute.xlu0 %777
    %779 = vrot.lane.b32.xlu0 %v655, 64
    %v780 = vpop.permute.xlu0 %779
    %v784 = vsel %vm182, %v775, 0
    %v787 = vsel %vm182, %v776, 0
    %789 = vmatprep.subr.bf16.mxu0 0
    %790 = vmatpush1.bf16.msra.mxu0 %v778
    %791 = vmatprep.subr.bf16.mxu0 0
    %792 = vmatpush1.bf16.msra.mxu0 %v780
    %793 = vmatprep.subr.bf16.mxu0 0
    %794 = vmatpush1.bf16.msra.mxu0 0
    %795 = vmatprep.subr.bf16.mxu0 0
    %796 = vmatpush1.bf16.msra.mxu0 0
    %797 = vmatprep.subr.bf16.mxu0 0
    %798 = vmatpush1.bf16.msra.mxu0 0
    %799 = vmatprep.subr.bf16.mxu0 0
    %800 = vmatpush1.bf16.msra.mxu0 0
    %801 = vmatprep.subr.bf16.mxu0 0
    %802 = vmatpush1.bf16.msra.mxu0 0
    %803 = vmatprep.subr.bf16.mxu0 0
    %804 = vmatpush1.bf16.msra.mxu0 0
    %805 = vmatprep.subr.bf16.mxu0 0
    %806 = vmatpush1.bf16.msra.mxu0 0
    %807 = vmatprep.subr.bf16.mxu0 0
    %808 = vmatpush1.bf16.msra.mxu0 0
    %809 = vmatprep.subr.bf16.mxu0 0
    %810 = vmatpush1.bf16.msra.mxu0 0
    %811 = vmatprep.subr.bf16.mxu0 0
    %812 = vmatpush1.bf16.msra.mxu0 0
    %813 = vmatprep.subr.bf16.mxu0 0
    %814 = vmatpush1.bf16.msra.mxu0 0
    %815 = vmatprep.subr.bf16.mxu0 0
    %816 = vmatpush1.bf16.msra.mxu0 0
    %817 = vmatprep.subr.bf16.mxu0 0
    %818 = vmatpush1.bf16.msra.mxu0 0
    %819 = vmatprep.subr.bf16.mxu0 0
    %820 = vmatpush1.bf16.msra.mxu0 0
    %821 = vmatprep.mubr.bf16.mxu0 0
    %822 = vmatmul.mubr.bf16.gmra.mrb[0].mxu0 %v784
    %v823 = vpop.f32.mrb[0].mxu0
    %v824 = vadd.f32 0.0, %v823
    %v825 = vpop.f32.mrb[0].mxu0
    %v826 = vpop.f32.mrb[0].mxu0
    %v827 = vadd.f32 0.0, %v826
    %v828 = vpop.f32.mrb[0].mxu0
    %829 = vmatprep.mubr.bf16.mxu0 0
    %830 = vmatmul.mubr.bf16.gmra.mrb[0].mxu0 %v787
    %v831 = vpop.f32.mrb[0].mxu0
    %v832 = vadd.f32 0.0, %v831
    %v833 = vpop.f32.mrb[0].mxu0
    %v834 = vpop.f32.mrb[0].mxu0
    %v835 = vadd.f32 0.0, %v834
    %v836 = vpop.f32.mrb[0].mxu0
    %837 = vdwg.mxu0
    %v838 = vpack.c.bf16 %v827, %v824
    %v839 = vpack.c.bf16 %v835, %v832
    %v841 = vsel %vm182, %v838, 0
    %v844 = vsel %vm182, %v839, 0
    %846 = vmatprep.subr.bf16.mxu0 0
    %847 = vmatpush1.bf16.msra.mxu0 %v432
    %848 = vmatprep.subr.bf16.mxu0 0
    %849 = vmatpush1.bf16.msra.mxu0 %v433
    %850 = vmatprep.subr.bf16.mxu0 0
    %851 = vmatpush1.bf16.msra.mxu0 0
    %852 = vmatprep.subr.bf16.mxu0 0
    %853 = vmatpush1.bf16.msra.mxu0 0
    %854 = vmatprep.subr.bf16.mxu0 0
    %855 = vmatpush1.bf16.msra.mxu0 0
    %856 = vmatprep.subr.bf16.mxu0 0
    %857 = vmatpush1.bf16.msra.mxu0 0
    %858 = vmatprep.subr.bf16.mxu0 0
    %859 = vmatpush1.bf16.msra.mxu0 0
    %860 = vmatprep.subr.bf16.mxu0 0
    %861 = vmatpush1.bf16.msra.mxu0 0
    %862 = vmatprep.subr.bf16.mxu0 0
    %863 = vmatpush1.bf16.msra.mxu0 0
    %864 = vmatprep.subr.bf16.mxu0 0
    %865 = vmatpush1.bf16.msra.mxu0 0
    %866 = vmatprep.subr.bf16.mxu0 0
    %867 = vmatpush1.bf16.msra.mxu0 0
    %868 = vmatprep.subr.bf16.mxu0 0
    %869 = vmatpush1.bf16.msra.mxu0 0
    %870 = vmatprep.subr.bf16.mxu0 0
    %871 = vmatpush1.bf16.msra.mxu0 0
    %872 = vmatprep.subr.bf16.mxu0 0
    %873 = vmatpush1.bf16.msra.mxu0 0
    %874 = vmatprep.subr.bf16.mxu0 0
    %875 = vmatpush1.bf16.msra.mxu0 0
    %876 = vmatprep.subr.bf16.mxu0 0
    %877 = vmatpush1.bf16.msra.mxu0 0
    %878 = vmatprep.mubr.bf16.mxu0 0
    %879 = vmatmul.mubr.bf16.gmra.mrb[0].mxu0 %v841
    %v880 = vpop.f32.mrb[0].mxu0
    %v881 = vadd.f32 0.0, %v880
    %v882 = vpop.f32.mrb[0].mxu0
    %v883 = vpop.f32.mrb[0].mxu0
    %v884 = vadd.f32 0.0, %v883
    %v885 = vpop.f32.mrb[0].mxu0
    %886 = vmatprep.mubr.bf16.mxu0 0
    %887 = vmatmul.mubr.bf16.gmra.mrb[0].mxu0 %v844
    %v888 = vpop.f32.mrb[0].mxu0
    %v889 = vadd.f32 0.0, %v888
    %v890 = vpop.f32.mrb[0].mxu0
    %v891 = vpop.f32.mrb[0].mxu0
    %v892 = vadd.f32 0.0, %v891
    %v893 = vpop.f32.mrb[0].mxu0
    %894 = vdwg.mxu0
    %899 = vrot.lane.b32.xlu0 %v881, 32
    %v900 = vpop.permute.xlu0 %899
    %901 = vrot.lane.b32.xlu0 %v884, 32
    %v902 = vpop.permute.xlu0 %901
    %903 = vrot.lane.b32.xlu0 %v889, 32
    %v904 = vpop.permute.xlu0 %903
    %905 = vrot.lane.b32.xlu0 %v892, 32
    %v906 = vpop.permute.xlu0 %905
    %v911 = vsel %vm182, %v593, %v900
    %v912 = vsel %vm182, %v594, %v902
    %v913 = vsel %vm182, %v595, %v904
    %v914 = vsel %vm182, %v596, %v906
    %v915 = vpack.c.bf16 %v912, %v911
    %v916 = vpack.c.bf16 %v914, %v913
    %v918 = vsel %vm537, %v915, 0
    %v921 = vsel %vm537, %v916, 0
    %923 = vmatprep.subr.bf16.mxu0 0
    %924 = vmatpush1.bf16.msra.mxu0 %v529
    %925 = vmatprep.subr.bf16.mxu0 0
    %926 = vmatpush1.bf16.msra.mxu0 %v530
    %927 = vmatprep.subr.bf16.mxu0 0
    %928 = vmatpush1.bf16.msra.mxu0 %v531
    %929 = vmatprep.subr.bf16.mxu0 0
    %930 = vmatpush1.bf16.msra.mxu0 %v532
    %931 = vmatprep.subr.bf16.mxu0 0
    %932 = vmatpush1.bf16.msra.mxu0 0
    %933 = vmatprep.subr.bf16.mxu0 0
    %934 = vmatpush1.bf16.msra.mxu0 0
    %935 = vmatprep.subr.bf16.mxu0 0
    %936 = vmatpush1.bf16.msra.mxu0 0
    %937 = vmatprep.subr.bf16.mxu0 0
    %938 = vmatpush1.bf16.msra.mxu0 0
    %939 = vmatprep.subr.bf16.mxu0 0
    %940 = vmatpush1.bf16.msra.mxu0 0
    %941 = vmatprep.subr.bf16.mxu0 0
    %942 = vmatpush1.bf16.msra.mxu0 0
    %943 = vmatprep.subr.bf16.mxu0 0
    %944 = vmatpush1.bf16.msra.mxu0 0
    %945 = vmatprep.subr.bf16.mxu0 0
    %946 = vmatpush1.bf16.msra.mxu0 0
    %947 = vmatprep.subr.bf16.mxu0 0
    %948 = vmatpush1.bf16.msra.mxu0 0
    %949 = vmatprep.subr.bf16.mxu0 0
    %950 = vmatpush1.bf16.msra.mxu0 0
    %951 = vmatprep.subr.bf16.mxu0 0
    %952 = vmatpush1.bf16.msra.mxu0 0
    %953 = vmatprep.subr.bf16.mxu0 0
    %954 = vmatpush1.bf16.msra.mxu0 0
    %955 = vmatprep.mubr.bf16.mxu0 0
    %956 = vmatmul.mubr.bf16.gmra.mrb[0].mxu0 %v918
    %v957 = vpop.f32.mrb[0].mxu0
    %v958 = vadd.f32 %v84, %v957
    %v959 = vpop.f32.mrb[0].mxu0
    %v960 = vpop.f32.mrb[0].mxu0
    %v961 = vadd.f32 %v84, %v960
    %v962 = vpop.f32.mrb[0].mxu0
    %963 = vmatprep.mubr.bf16.mxu0 0
    %964 = vmatmul.mubr.bf16.gmra.mrb[0].mxu0 %v921
    %v965 = vpop.f32.mrb[0].mxu0
    %v966 = vadd.f32 %v84, %v965
    %v967 = vpop.f32.mrb[0].mxu0
    %v968 = vpop.f32.mrb[0].mxu0
    %v969 = vadd.f32 %v84, %v968
    %v970 = vpop.f32.mrb[0].mxu0
    %971 = vdwg.mxu0
    %v972 = vmax.f32 %v958, 0.0
    %v973 = vmax.f32 %v961, 0.0
    %v974 = vmax.f32 %v966, 0.0
    %v975 = vmax.f32 %v969, 0.0
    %v976 = vpack.c.bf16 %v973, %v972
    %v977 = vpack.c.bf16 %v975, %v974
    %v979 = vsel %vm182, %v976, 0
    %v982 = vsel %vm182, %v977, 0
    %984 = vmatprep.subr.bf16.mxu0 0
    %985 = vmatpush1.bf16.msra.mxu0 %v178
    %986 = vmatprep.subr.bf16.mxu0 0
    %987 = vmatpush1.bf16.msra.mxu0 %v179
    %988 = vmatprep.subr.bf16.mxu0 0
    %989 = vmatpush1.bf16.msra.mxu0 0
    %990 = vmatprep.subr.bf16.mxu0 0
    %991 = vmatpush1.bf16.msra.mxu0 0
    %992 = vmatprep.subr.bf16.mxu0 0
    %993 = vmatpush1.bf16.msra.mxu0 0
    %994 = vmatprep.subr.bf16.mxu0 0
    %995 = vmatpush1.bf16.msra.mxu0 0
    %996 = vmatprep.subr.bf16.mxu0 0
    %997 = vmatpush1.bf16.msra.mxu0 0
    %998 = vmatprep.subr.bf16.mxu0 0
    %999 = vmatpush1.bf16.msra.mxu0 0
    %1000 = vmatprep.subr.bf16.mxu0 0
    %1001 = vmatpush1.bf16.msra.mxu0 0
    %1002 = vmatprep.subr.bf16.mxu0 0
    %1003 = vmatpush1.bf16.msra.mxu0 0
    %1004 = vmatprep.subr.bf16.mxu0 0
    %1005 = vmatpush1.bf16.msra.mxu0 0
    %1006 = vmatprep.subr.bf16.mxu0 0
    %1007 = vmatpush1.bf16.msra.mxu0 0
    %1008 = vmatprep.subr.bf16.mxu0 0
    %1009 = vmatpush1.bf16.msra.mxu0 0
    %1010 = vmatprep.subr.bf16.mxu0 0
    %1011 = vmatpush1.bf16.msra.mxu0 0
    %1012 = vmatprep.subr.bf16.mxu0 0
    %1013 = vmatpush1.bf16.msra.mxu0 0
    %1014 = vmatprep.subr.bf16.mxu0 0
    %1015 = vmatpush1.bf16.msra.mxu0 0
    %1016 = vmatprep.mubr.bf16.mxu0 0
    %1017 = vmatmul.mubr.bf16.gmra.mrb[0].mxu0 %v979
    %v1018 = vpop.f32.mrb[0].mxu0
    %v1019 = vadd.f32 0.0, %v1018
    %v1020 = vpop.f32.mrb[0].mxu0
    %v1021 = vpop.f32.mrb[0].mxu0
    %v1022 = vadd.f32 0.0, %v1021
    %v1023 = vpop.f32.mrb[0].mxu0
    %1024 = vmatprep.mubr.bf16.mxu0 0
    %1025 = vmatmul.mubr.bf16.gmra.mrb[0].mxu0 %v982
    %v1026 = vpop.f32.mrb[0].mxu0
    %v1027 = vadd.f32 0.0, %v1026
    %v1028 = vpop.f32.mrb[0].mxu0
    %v1029 = vpop.f32.mrb[0].mxu0
    %v1030 = vadd.f32 0.0, %v1029
    %v1031 = vpop.f32.mrb[0].mxu0
    %1032 = vdwg.mxu0
    %v1033 = vpack.c.bf16 %v1022, %v1019
    %v1034 = vpack.c.bf16 %v1030, %v1027
    %1037 = vrot.lane.b32.xlu0 %v1033, 96
    %v1038 = vpop.permute.xlu0 %1037
    %1039 = vrot.lane.b32.xlu0 %v1034, 96
    %v1040 = vpop.permute.xlu0 %1039
    %v1042 = vsel %vm182, %v1033, 0
    %v1045 = vsel %vm182, %v1034, 0
    %v1048 = vsel %vm182, %v1038, 0
    %v1051 = vsel %vm182, %v1040, 0
    %1053 = vmatprep.subr.bf16.mxu0 0
    %1054 = vmatpush1.bf16.xpose.msra.mxu0 %v1048
    %1055 = vmatprep.subr.bf16.mxu0 0
    %1056 = vmatpush1.bf16.xpose.msra.mxu0 %v1051
    %1057 = vmatprep.subr.bf16.mxu0 0
    %1058 = vmatpush1.bf16.xpose.msra.mxu0 0
    %1059 = vmatprep.subr.bf16.mxu0 0
    %1060 = vmatpush1.bf16.xpose.msra.mxu0 0
    %1061 = vmatprep.subr.bf16.mxu0 0
    %1062 = vmatpush1.bf16.xpose.msra.mxu0 0
    %1063 = vmatprep.subr.bf16.mxu0 0
    %1064 = vmatpush1.bf16.xpose.msra.mxu0 0
    %1065 = vmatprep.subr.bf16.mxu0 0
    %1066 = vmatpush1.bf16.xpose.msra.mxu0 0
    %1067 = vmatprep.subr.bf16.mxu0 0
    %1068 = vmatpush1.bf16.xpose.msra.mxu0 0
    %1069 = vmatprep.subr.bf16.mxu0 0
    %1070 = vmatpush1.bf16.xpose.msra.mxu0 0
    %1071 = vmatprep.subr.bf16.mxu0 0
    %1072 = vmatpush1.bf16.xpose.msra.mxu0 0
    %1073 = vmatprep.subr.bf16.mxu0 0
    %1074 = vmatpush1.bf16.xpose.msra.mxu0 0
    %1075 = vmatprep.subr.bf16.mxu0 0
    %1076 = vmatpush1.bf16.xpose.msra.mxu0 0
    %1077 = vmatprep.subr.bf16.mxu0 0
    %1078 = vmatpush1.bf16.xpose.msra.mxu0 0
    %1079 = vmatprep.subr.bf16.mxu0 0
    %1080 = vmatpush1.bf16.xpose.msra.mxu0 0
    %1081 = vmatprep.subr.bf16.mxu0 0
    %1082 = vmatpush1.bf16.xpose.msra.mxu0 0
    %1083 = vmatprep.subr.bf16.mxu0 0
    %1084 = vmatpush1.bf16.xpose.msra.mxu0 0
    %1085 = vmatprep.mubr.bf16.mxu0 0
    %1086 = vmatmul.mubr.bf16.gmra.mrb[0].mxu0 %v1042
    %v1087 = vpop.f32.mrb[0].mxu0
    %v1088 = vadd.f32 0.0, %v1087
    %v1089 = vpop.f32.mrb[0].mxu0
    %v1090 = vpop.f32.mrb[0].mxu0
    %v1091 = vadd.f32 0.0, %v1090
    %v1092 = vpop.f32.mrb[0].mxu0
    %1093 = vmatprep.mubr.bf16.mxu0 0
    %1094 = vmatmul.mubr.bf16.gmra.mrb[0].mxu0 %v1045
    %v1095 = vpop.f32.mrb[0].mxu0
    %v1096 = vadd.f32 0.0, %v1095
    %v1097 = vpop.f32.mrb[0].mxu0
    %v1098 = vpop.f32.mrb[0].mxu0
    %v1099 = vadd.f32 0.0, %v1098
    %v1100 = vpop.f32.mrb[0].mxu0
    %1101 = vdwg.mxu0
    %v1102 = vsel %vm56, -1e+30, %v1088
    %v1103 = vsel %vm57, -1e+30, %v1091
    %v1104 = vsel %vm58, -1e+30, %v1096
    %v1105 = vsel %vm59, -1e+30, %v1099
    %v1106 = vsel %vm182, %v1102, -inf
    %1107 = vmax.xlane.f32.xlu0 %v1106
    %v1108 = vpop.xlane.xlu0 %1107
    %v1109 = vsel %vm182, %v1103, -inf
    %1110 = vmax.xlane.f32.xlu0 %v1109
    %v1111 = vpop.xlane.xlu0 %1110
    %v1112 = vsel %vm182, %v1104, -inf
    %1113 = vmax.xlane.f32.xlu0 %v1112
    %v1114 = vpop.xlane.xlu0 %1113
    %v1115 = vsel %vm182, %v1105, -inf
    %1116 = vmax.xlane.f32.xlu0 %v1115
    %v1117 = vpop.xlane.xlu0 %1116
    %v1118 = vsub.f32 %v1102, %v1108
    %v1119 = vsub.f32 %v1103, %v1111
    %v1120 = vsub.f32 %v1104, %v1114
    %v1121 = vsub.f32 %v1105, %v1117
    %v1122 = vmul.f32 %v1118, 1.442695
    %v1123 = vpow.pop %v1122
    %v1124 = vmul.f32 %v1119, 1.442695
    %v1125 = vpow.pop %v1124
    %v1126 = vmul.f32 %v1120, 1.442695
    %v1127 = vpow.pop %v1126
    %v1128 = vmul.f32 %v1121, 1.442695
    %v1129 = vpow.pop %v1128
    %v1130 = vsel %vm182, %v1123, 0.0
    %1131 = vadd.xlane.f32.xlu0 %v1130
    %v1132 = vpop.xlane.xlu0 %1131
    %v1133 = vsel %vm182, %v1125, 0.0
    %1134 = vadd.xlane.f32.xlu0 %v1133
    %v1135 = vpop.xlane.xlu0 %1134
    %v1136 = vsel %vm182, %v1127, 0.0
    %1137 = vadd.xlane.f32.xlu0 %v1136
    %v1138 = vpop.xlane.xlu0 %1137
    %v1139 = vsel %vm182, %v1129, 0.0
    %1140 = vadd.xlane.f32.xlu0 %v1139
    %v1141 = vpop.xlane.xlu0 %1140
    %v1142 = vrcp.pop %v1132
    %v1143 = vmul.f32 %v1123, %v1142
    %v1144 = vrcp.pop %v1135
    %v1145 = vmul.f32 %v1125, %v1144
    %v1146 = vrcp.pop %v1138
    %v1147 = vmul.f32 %v1127, %v1146
    %v1148 = vrcp.pop %v1141
    %v1149 = vmul.f32 %v1129, %v1148
    %v1150 = vsel %vm56, 0.0, %v1143
    %v1151 = vsel %vm57, 0.0, %v1145
    %v1152 = vsel %vm58, 0.0, %v1147
    %v1153 = vsel %vm59, 0.0, %v1149
    %v1154 = vpack.c.bf16 %v1151, %v1150
    %v1155 = vpack.c.bf16 %v1153, %v1152
    %1156 = vrot.lane.b32.xlu0 %v1033, 64
    %v1157 = vpop.permute.xlu0 %1156
    %1158 = vrot.lane.b32.xlu0 %v1034, 64
    %v1159 = vpop.permute.xlu0 %1158
    %v1163 = vsel %vm182, %v1154, 0
    %v1166 = vsel %vm182, %v1155, 0
    %1168 = vmatprep.subr.bf16.mxu0 0
    %1169 = vmatpush1.bf16.msra.mxu0 %v1157
    %1170 = vmatprep.subr.bf16.mxu0 0
    %1171 = vmatpush1.bf16.msra.mxu0 %v1159
    %1172 = vmatprep.subr.bf16.mxu0 0
    %1173 = vmatpush1.bf16.msra.mxu0 0
    %1174 = vmatprep.subr.bf16.mxu0 0
    %1175 = vmatpush1.bf16.msra.mxu0 0
    %1176 = vmatprep.subr.bf16.mxu0 0
    %1177 = vmatpush1.bf16.msra.mxu0 0
    %1178 = vmatprep.subr.bf16.mxu0 0
    %1179 = vmatpush1.bf16.msra.mxu0 0
    %1180 = vmatprep.subr.bf16.mxu0 0
    %1181 = vmatpush1.bf16.msra.mxu0 0
    %1182 = vmatprep.subr.bf16.mxu0 0
    %1183 = vmatpush1.bf16.msra.mxu0 0
    %1184 = vmatprep.subr.bf16.mxu0 0
    %1185 = vmatpush1.bf16.msra.mxu0 0
    %1186 = vmatprep.subr.bf16.mxu0 0
    %1187 = vmatpush1.bf16.msra.mxu0 0
    %1188 = vmatprep.subr.bf16.mxu0 0
    %1189 = vmatpush1.bf16.msra.mxu0 0
    %1190 = vmatprep.subr.bf16.mxu0 0
    %1191 = vmatpush1.bf16.msra.mxu0 0
    %1192 = vmatprep.subr.bf16.mxu0 0
    %1193 = vmatpush1.bf16.msra.mxu0 0
    %1194 = vmatprep.subr.bf16.mxu0 0
    %1195 = vmatpush1.bf16.msra.mxu0 0
    %1196 = vmatprep.subr.bf16.mxu0 0
    %1197 = vmatpush1.bf16.msra.mxu0 0
    %1198 = vmatprep.subr.bf16.mxu0 0
    %1199 = vmatpush1.bf16.msra.mxu0 0
    %1200 = vmatprep.mubr.bf16.mxu0 0
    %1201 = vmatmul.mubr.bf16.gmra.mrb[0].mxu0 %v1163
    %v1202 = vpop.f32.mrb[0].mxu0
    %v1203 = vadd.f32 0.0, %v1202
    %v1204 = vpop.f32.mrb[0].mxu0
    %v1205 = vpop.f32.mrb[0].mxu0
    %v1206 = vadd.f32 0.0, %v1205
    %v1207 = vpop.f32.mrb[0].mxu0
    %1208 = vmatprep.mubr.bf16.mxu0 0
    %1209 = vmatmul.mubr.bf16.gmra.mrb[0].mxu0 %v1166
    %v1210 = vpop.f32.mrb[0].mxu0
    %v1211 = vadd.f32 0.0, %v1210
    %v1212 = vpop.f32.mrb[0].mxu0
    %v1213 = vpop.f32.mrb[0].mxu0
    %v1214 = vadd.f32 0.0, %v1213
    %v1215 = vpop.f32.mrb[0].mxu0
    %1216 = vdwg.mxu0
    %v1217 = vpack.c.bf16 %v1206, %v1203
    %v1218 = vpack.c.bf16 %v1214, %v1211
    %v1220 = vsel %vm182, %v1217, 0
    %v1223 = vsel %vm182, %v1218, 0
    %1225 = vmatprep.subr.bf16.mxu0 0
    %1226 = vmatpush1.bf16.msra.mxu0 %v432
    %1227 = vmatprep.subr.bf16.mxu0 0
    %1228 = vmatpush1.bf16.msra.mxu0 %v433
    %1229 = vmatprep.subr.bf16.mxu0 0
    %1230 = vmatpush1.bf16.msra.mxu0 0
    %1231 = vmatprep.subr.bf16.mxu0 0
    %1232 = vmatpush1.bf16.msra.mxu0 0
    %1233 = vmatprep.subr.bf16.mxu0 0
    %1234 = vmatpush1.bf16.msra.mxu0 0
    %1235 = vmatprep.subr.bf16.mxu0 0
    %1236 = vmatpush1.bf16.msra.mxu0 0
    %1237 = vmatprep.subr.bf16.mxu0 0
    %1238 = vmatpush1.bf16.msra.mxu0 0
    %1239 = vmatprep.subr.bf16.mxu0 0
    %1240 = vmatpush1.bf16.msra.mxu0 0
    %1241 = vmatprep.subr.bf16.mxu0 0
    %1242 = vmatpush1.bf16.msra.mxu0 0
    %1243 = vmatprep.subr.bf16.mxu0 0
    %1244 = vmatpush1.bf16.msra.mxu0 0
    %1245 = vmatprep.subr.bf16.mxu0 0
    %1246 = vmatpush1.bf16.msra.mxu0 0
    %1247 = vmatprep.subr.bf16.mxu0 0
    %1248 = vmatpush1.bf16.msra.mxu0 0
    %1249 = vmatprep.subr.bf16.mxu0 0
    %1250 = vmatpush1.bf16.msra.mxu0 0
    %1251 = vmatprep.subr.bf16.mxu0 0
    %1252 = vmatpush1.bf16.msra.mxu0 0
    %1253 = vmatprep.subr.bf16.mxu0 0
    %1254 = vmatpush1.bf16.msra.mxu0 0
    %1255 = vmatprep.subr.bf16.mxu0 0
    %1256 = vmatpush1.bf16.msra.mxu0 0
    %1257 = vmatprep.mubr.bf16.mxu0 0
    %1258 = vmatmul.mubr.bf16.gmra.mrb[0].mxu0 %v1220
    %v1259 = vpop.f32.mrb[0].mxu0
    %v1260 = vadd.f32 0.0, %v1259
    %v1261 = vpop.f32.mrb[0].mxu0
    %v1262 = vpop.f32.mrb[0].mxu0
    %v1263 = vadd.f32 0.0, %v1262
    %v1264 = vpop.f32.mrb[0].mxu0
    %1265 = vmatprep.mubr.bf16.mxu0 0
    %1266 = vmatmul.mubr.bf16.gmra.mrb[0].mxu0 %v1223
    %v1267 = vpop.f32.mrb[0].mxu0
    %v1268 = vadd.f32 0.0, %v1267
    %v1269 = vpop.f32.mrb[0].mxu0
    %v1270 = vpop.f32.mrb[0].mxu0
    %v1271 = vadd.f32 0.0, %v1270
    %v1272 = vpop.f32.mrb[0].mxu0
    %1273 = vdwg.mxu0
    %1278 = vrot.lane.b32.xlu0 %v1260, 32
    %v1279 = vpop.permute.xlu0 %1278
    %1280 = vrot.lane.b32.xlu0 %v1263, 32
    %v1281 = vpop.permute.xlu0 %1280
    %1282 = vrot.lane.b32.xlu0 %v1268, 32
    %v1283 = vpop.permute.xlu0 %1282
    %1284 = vrot.lane.b32.xlu0 %v1271, 32
    %v1285 = vpop.permute.xlu0 %1284
    %v1290 = vsel %vm182, %v972, %v1279
    %v1291 = vsel %vm182, %v973, %v1281
    %v1292 = vsel %vm182, %v974, %v1283
    %v1293 = vsel %vm182, %v975, %v1285
    %v1294 = vpack.c.bf16 %v1291, %v1290
    %v1295 = vpack.c.bf16 %v1293, %v1292
    %v1297 = vsel %vm537, %v1294, 0
    %v1300 = vsel %vm537, %v1295, 0
    %1302 = vmatprep.subr.bf16.mxu0 0
    %1303 = vmatpush1.bf16.msra.mxu0 %v529
    %1304 = vmatprep.subr.bf16.mxu0 0
    %1305 = vmatpush1.bf16.msra.mxu0 %v530
    %1306 = vmatprep.subr.bf16.mxu0 0
    %1307 = vmatpush1.bf16.msra.mxu0 %v531
    %1308 = vmatprep.subr.bf16.mxu0 0
    %1309 = vmatpush1.bf16.msra.mxu0 %v532
    %1310 = vmatprep.subr.bf16.mxu0 0
    %1311 = vmatpush1.bf16.msra.mxu0 0
    %1312 = vmatprep.subr.bf16.mxu0 0
    %1313 = vmatpush1.bf16.msra.mxu0 0
    %1314 = vmatprep.subr.bf16.mxu0 0
    %1315 = vmatpush1.bf16.msra.mxu0 0
    %1316 = vmatprep.subr.bf16.mxu0 0
    %1317 = vmatpush1.bf16.msra.mxu0 0
    %1318 = vmatprep.subr.bf16.mxu0 0
    %1319 = vmatpush1.bf16.msra.mxu0 0
    %1320 = vmatprep.subr.bf16.mxu0 0
    %1321 = vmatpush1.bf16.msra.mxu0 0
    %1322 = vmatprep.subr.bf16.mxu0 0
    %1323 = vmatpush1.bf16.msra.mxu0 0
    %1324 = vmatprep.subr.bf16.mxu0 0
    %1325 = vmatpush1.bf16.msra.mxu0 0
    %1326 = vmatprep.subr.bf16.mxu0 0
    %1327 = vmatpush1.bf16.msra.mxu0 0
    %1328 = vmatprep.subr.bf16.mxu0 0
    %1329 = vmatpush1.bf16.msra.mxu0 0
    %1330 = vmatprep.subr.bf16.mxu0 0
    %1331 = vmatpush1.bf16.msra.mxu0 0
    %1332 = vmatprep.subr.bf16.mxu0 0
    %1333 = vmatpush1.bf16.msra.mxu0 0
    %1334 = vmatprep.mubr.bf16.mxu0 0
    %1335 = vmatmul.mubr.bf16.gmra.mrb[0].mxu0 %v1297
    %v1336 = vpop.f32.mrb[0].mxu0
    %v1337 = vadd.f32 %v84, %v1336
    %v1338 = vpop.f32.mrb[0].mxu0
    %v1339 = vpop.f32.mrb[0].mxu0
    %v1340 = vadd.f32 %v84, %v1339
    %v1341 = vpop.f32.mrb[0].mxu0
    %1342 = vmatprep.mubr.bf16.mxu0 0
    %1343 = vmatmul.mubr.bf16.gmra.mrb[0].mxu0 %v1300
    %v1344 = vpop.f32.mrb[0].mxu0
    %v1345 = vadd.f32 %v84, %v1344
    %v1346 = vpop.f32.mrb[0].mxu0
    %v1347 = vpop.f32.mrb[0].mxu0
    %v1348 = vadd.f32 %v84, %v1347
    %v1349 = vpop.f32.mrb[0].mxu0
    %1350 = vdwg.mxu0
    %v1351 = vmax.f32 %v1337, 0.0
    %v1352 = vmax.f32 %v1340, 0.0
    %v1353 = vmax.f32 %v1345, 0.0
    %v1354 = vmax.f32 %v1348, 0.0
    %1355 = vst.msk [vmem:[#allocation5] sm:$0xff] %vm182, %v1351
    %1356 = vst.msk [vmem:[#allocation5 + $0x8] sm:$0xff] %vm182, %v1352
    %1357 = vst.msk [vmem:[#allocation5 + $0x10] sm:$0xff] %vm182, %v1353
    %1358 = vst.msk [vmem:[#allocation5 + $0x18] sm:$0xff] %vm182, %v1354
    %1359 = vst.msk [vmem:[#allocation6] sm:$0xff] %vm182, %v1150
    %1360 = vst.msk [vmem:[#allocation6 + $0x8] sm:$0xff] %vm182, %v1151
    %1361 = vst.msk [vmem:[#allocation6 + $0x10] sm:$0xff] %vm182, %v1152
    %1362 = vst.msk [vmem:[#allocation6 + $0x18] sm:$0xff] %vm182, %v1153
    // Predicated region
    $region38: #{tpu_custom_call.1} parent=1 // pred_check
      _
    $region39: #{tpu_custom_call.1} parent=1 // pred_check_branch
      %1364 = sbr.rel (0) target = $region41
    $region40: #{tpu_custom_call.1} parent=1 // pred_region
      %s1366 = ssub.s32 512, 512
      %1367 = vsyncadd [#allocation4], %s1366
      %s1368 = sshll.u32 [#allocation5], 4
      %s1369 = int_to_ptr.vmem [resolvable:$true] %s1368
      %1374 = dma.vmem_to_hbm [thread:$0]  %s1369, 512, %s8, [#allocation4], 128, 128, 8
    $region41: #{tpu_custom_call.1} parent=1 // pred_fallthru
      _
    // Predicated region
    $region42: #{tpu_custom_call.1} parent=1 // pred_check
      _
    $region43: #{tpu_custom_call.1} parent=1 // pred_check_branch
      %1376 = sbr.rel (0) target = $region45
    $region44: #{tpu_custom_call.1} parent=1 // pred_region
      %s1378 = ssub.s32 512, 512
      %1379 = vsyncadd [#allocation7], %s1378
      %s1380 = sshll.u32 [#allocation6], 4
      %s1381 = int_to_ptr.vmem [resolvable:$true] %s1380
      %1386 = dma.vmem_to_hbm [thread:$0]  %s1381, 512, %s9, [#allocation7], 128, 128, 8
    $region45: #{tpu_custom_call.1} parent=1 // pred_fallthru
      _
    // Predicated region
    $region46: #{tpu_custom_call.1} parent=1 // pred_check
      _
    $region47: #{tpu_custom_call.1} parent=1 // pred_check_branch
      %1388 = sbr.rel (0) target = $region49
    $region48: #{tpu_custom_call.1} parent=1 // pred_region
      %1389 = dma.done [#allocation4], 512
    $region49: #{tpu_custom_call.1} parent=1 // pred_fallthru
      _
    // Predicated region
    $region50: #{tpu_custom_call.1} parent=1 // pred_check
      _
    $region51: #{tpu_custom_call.1} parent=1 // pred_check_branch
      %1391 = sbr.rel (0) target = $region53
    $region52: #{tpu_custom_call.1} parent=1 // pred_region
      %1392 = dma.done [#allocation7], 512
    $region53: #{tpu_custom_call.1} parent=1 // pred_fallthru
      _
    %1393 = vsyncpa [#allocation3], 1
    %1394 = vsyncpa [#allocation4], 1
    %1395 = vsyncpa [#allocation7], 1

</llo_original>
